<compile_context>
chip_gen: v7x
topology: tpu7x:2x2x1
jax: 0.10.0
libtpu: 0.0.40
codegen_flags: <defaults>
</compile_context>

<pallas_src>
import functools

import numpy as np
import jax
import jax.numpy as jnp
from jax.experimental import pallas as pl
from jax.experimental.pallas import tpu as pltpu


# ---------------------------------------------------------------------------
# 2D sincos positional embedding (same construction as get_2d_sincos_pos_embed)
# ---------------------------------------------------------------------------
def _get_1d_sincos(embed_dim, pos):
    omega = np.arange(embed_dim // 2, dtype=np.float64)
    omega /= embed_dim / 2.0
    omega = 1.0 / 10000 ** omega
    pos = pos.reshape(-1)
    out = np.einsum("m,d->md", pos, omega)
    return np.concatenate([np.sin(out), np.cos(out)], axis=1)


def get_2d_sincos_pos_embed(embed_dim, grid_size, cls_token=False):
    grid_h = np.arange(grid_size, dtype=np.float32)
    grid_w = np.arange(grid_size, dtype=np.float32)
    grid = np.meshgrid(grid_w, grid_h)            # w goes first
    grid = np.stack(grid, axis=0).reshape([2, 1, grid_size, grid_size])
    emb_h = _get_1d_sincos(embed_dim // 2, grid[0])
    emb_w = _get_1d_sincos(embed_dim // 2, grid[1])
    pos = np.concatenate([emb_h, emb_w], axis=1)
    if cls_token:
        pos = np.concatenate([np.zeros([1, embed_dim]), pos], axis=0)
    return pos.astype(np.float32)


# ---------------------------------------------------------------------------
# Kernel helpers
# ---------------------------------------------------------------------------
def _layernorm(x, gamma, beta, eps):
    mu = jnp.mean(x, axis=-1, keepdims=True)
    var = jnp.mean((x - mu) ** 2, axis=-1, keepdims=True)
    return (x - mu) * jax.lax.rsqrt(var + eps) * gamma + beta


# ---------------------------------------------------------------------------
# Pallas kernel: one grid step = `batch_per_step` batch elements (default: all)
# ---------------------------------------------------------------------------
def lvlm_image_tokens_kernel(
    feats_ref,                                   # (Bt*S, Dv) bf16
    qproj_ref,                                   # (H, Q, hd) bf16 (scale folded in)
    queries_ref,                                 # (Bt*Q, E) f32 (residual)
    posk_ref,                                    # (Bt*S, E) f32 (pos_embed @ Wk, tiled)
    wvl_ref,                                     # (Dv, E) bf16  vision_linear weight
    wkv_ref,                                     # (E, 2E) bf16  fused K/V weight
    wo_ref,                                      # (E, E)  bf16  attention out proj
    w1_ref,                                      # (E, 2E) bf16  MLP up
    w2_ref,                                      # (2E, E) bf16  MLP down
    vecs_ref,                                    # (8, E)  f32   packed small vectors
    b1_ref,                                      # (1, 2E) f32   MLP up bias
    out_ref,                                     # (Bt*Q, E) bf16
    *, num_heads, batch_per_step,
):
    f32 = jnp.float32
    bf16 = jnp.bfloat16
    H = num_heads
    Bt = batch_per_step
    _, Q, hd = qproj_ref.shape
    E = H * hd
    S = feats_ref.shape[0] // Bt

    # Packed parameter vectors: rows = [bvl, gvl, bln, gpn, bpn, b2, gmn, bmn].
    vecs = vecs_ref[...]
    bvl, gvl, bln = vecs[0:1], vecs[1:2], vecs[2:3]
    gpn, bpn = vecs[3:4], vecs[4:5]
    b2, gmn, bmn = vecs[5:6], vecs[6:7], vecs[7:8]

    # vision_linear: Linear -> Dropout(eval=id) -> LayerNorm(eps=1e-5).
    # One MXU pass over all Bt*S rows (batch folded).
    feats = feats_ref[...]                                          # bf16
    x = jnp.dot(feats, wvl_ref[...], preferred_element_type=f32) + bvl
    x = _layernorm(x, gvl, bln, 1e-5)                               # (Bt*S, E) f32

    # Fused K/V projection, one MXU pass.  (x + pos) @ Wk == x @ Wk + pos @ Wk,
    # and pos @ Wk (posk) was hoisted to the wrapper.
    kv = jnp.dot(x.astype(bf16), wkv_ref[...], preferred_element_type=f32)  # (Bt*S, 2E)
    k = (kv[:, :E] + posk_ref[...]).astype(bf16)                    # (Bt*S, E)
    v = kv[:, E:].astype(bf16)                                      # (Bt*S, E)

    qproj = qproj_ref[...]                                          # (H, Q, hd) bf16

    # One QK^T per head covering ALL batch elements (q is batch-invariant);
    # contract the last dims so the K transpose folds into the MXU operand load.
    dn = (((1,), (1,)), ((), ()))
    scores = [
        jax.lax.dot_general(qproj[h], k[:, h * hd:(h + 1) * hd], dn,
                            preferred_element_type=f32)             # (Q, Bt*S)
        for h in range(H)
    ]
    s_all = jnp.concatenate(scores, axis=0)                         # (H*Q, Bt*S)

    # Collapsed softmax: one max/exp/sum/recip pass per batch element over all
    # heads at once.  approx reciprocal (EUP) -> probs sum to 1 within ~1e-3,
    # fine at inference tolerances.
    tok_rows = []
    for b in range(Bt):
        s_b = s_all[:, b * S:(b + 1) * S]                           # (H*Q, S)
        s_b = s_b - jnp.max(s_b, axis=-1, keepdims=True)
        p_b = jnp.exp(s_b)
        p_b = p_b * pl.reciprocal(jnp.sum(p_b, axis=-1, keepdims=True), approx=True)
        p_b = p_b.astype(bf16)
        head_outs = [
            jnp.dot(p_b[h * Q:(h + 1) * Q, :],
                    v[b * S:(b + 1) * S, h * hd:(h + 1) * hd],
                    preferred_element_type=f32)                     # (Q, hd)
            for h in range(H)
        ]
        tok_rows.append(jnp.concatenate(head_outs, axis=-1))        # (Q, E)
    attn = jnp.concatenate(tok_rows, axis=0)                        # (Bt*Q, E) f32

    # Output projection + residual with queries, post_vision_norm (eps=1e-4).
    attn = jnp.dot(attn.astype(bf16), wo_ref[...], preferred_element_type=f32)
    tok = queries_ref[...] + attn
    tok = _layernorm(tok, gpn, bpn, 1e-4)

    # vision_mlp: Linear -> SiLU -> Dropout(id) -> Linear -> Dropout(id), residual.
    h1 = jnp.dot(tok.astype(bf16), w1_ref[...], preferred_element_type=f32) + b1_ref[...]
    h1 = h1 * jax.nn.sigmoid(h1)                                    # SiLU
    h2 = jnp.dot(h1.astype(bf16), w2_ref[...], preferred_element_type=f32) + b2
    tok = tok + h2

    tok = _layernorm(tok, gmn, bmn, 1e-4)
    out_ref[...] = tok.astype(out_ref.dtype)


# ---------------------------------------------------------------------------
# Wrapper
# ---------------------------------------------------------------------------
def lvlm_image_tokens(vision_feats, params, *, num_heads=4, batch_per_step=None):
    B, S, Dv = vision_feats.shape
    _, Q, E = params["queries"].shape
    hd = E // num_heads
    f32 = jnp.float32
    bf16 = jnp.bfloat16

    # NOTE(perf): default = fold the whole batch into ONE grid step (best for
    # single-TC v5e/v6e: no per-step overhead, shared projections launched
    # once).  On v7x (2 TensorCores) pass batch_per_step=B//2 so each core
    # takes half the batch; for production adapter dims also tile w1/w2/wvl
    # over an "arbitrary" reduction axis and set vmem_limit_bytes explicitly.
    if batch_per_step is None:
        batch_per_step = B
    assert B % batch_per_step == 0
    Bt = batch_per_step
    num_steps = B // Bt

    # -------- one-time, batch-invariant precompute (hoisted out of kernel) ----
    queries_f32 = params["queries"][0].astype(f32)                             # (Q, E)
    q_proj = (queries_f32 @ params["wq"].astype(f32)) * (1.0 / np.sqrt(hd))    # (Q, E)
    q_proj = q_proj.reshape(Q, num_heads, hd).transpose(1, 0, 2).astype(bf16)  # (H, Q, hd)
    pos_k = params["pos_embed"][0].astype(f32) @ params["wk"].astype(f32)      # (S, E)
    posk_t = jnp.tile(pos_k, (Bt, 1))                                          # (Bt*S, E)
    queries_t = jnp.tile(queries_f32, (Bt, 1))                                 # (Bt*Q, E)
    wkv = jnp.concatenate([params["wk"], params["wv"]], axis=1)                # (E, 2E) bf16

    # Pack the small per-channel vectors into one f32 array (one DMA, one tile).
    vecs = jnp.stack(
        [params["bvl"].reshape(-1), params["gvl"].reshape(-1),
         params["bln"].reshape(-1), params["gpn"].reshape(-1),
         params["bpn"].reshape(-1), params["b2"].reshape(-1),
         params["gmn"].reshape(-1), params["bmn"].reshape(-1)], axis=0
    ).astype(f32)                                                              # (8, E)
    b1 = params["b1"].reshape(1, -1).astype(f32)                               # (1, 2E)

    feats_flat = vision_feats.reshape(B * S, Dv)                               # (B*S, Dv)

    def const(shape):
        n = len(shape)
        return pl.BlockSpec(shape, lambda i, _n=n: (0,) * _n)

    in_specs = [
        pl.BlockSpec((Bt * S, Dv), lambda i: (i, 0)),   # per-step vision features
        const((num_heads, Q, hd)),                      # q_proj (scaled)
        const((Bt * Q, E)),                             # queries (residual)
        const((Bt * S, E)),                             # pos_embed @ Wk
        const((Dv, E)),                                 # vision_linear weight
        const((E, 2 * E)),                              # fused KV weight
        const((E, E)),                                  # Wo
        const((E, 2 * E)),                              # MLP w1
        const((2 * E, E)),                              # MLP w2
        const((8, E)),                                  # packed LN/bias vectors
        const((1, 2 * E)),                              # MLP b1
    ]
    out_specs = pl.BlockSpec((Bt * Q, E), lambda i: (i, 0))

    args = (
        feats_flat, q_proj, queries_t, posk_t,
        params["wvl"], wkv, params["wo"], params["w1"], params["w2"],
        vecs, b1,
    )

    out = pl.pallas_call(
        functools.partial(lvlm_image_tokens_kernel,
                          num_heads=num_heads, batch_per_step=Bt),
        out_shape=jax.ShapeDtypeStruct((B * Q, E), bf16),
        grid_spec=pltpu.PrefetchScalarGridSpec(
            num_scalar_prefetch=0,
            grid=(num_steps,),
            in_specs=in_specs,
            out_specs=out_specs,
        ),
        compiler_params=pltpu.CompilerParams(dimension_semantics=("parallel",)),
    )(*args)

    return out.reshape(B, Q, E)


# ---------------------------------------------------------------------------
# Pure-JAX reference (same math, f32) for a correctness check
# ---------------------------------------------------------------------------
def reference(vision_feats, p, num_heads=4):
    f32 = jnp.float32
    x = vision_feats.astype(f32) @ p["wvl"].astype(f32) + p["bvl"].astype(f32)
    x = _layernorm(x, p["gvl"].astype(f32), p["bln"].astype(f32), 1e-5)
    pos = p["pos_embed"].astype(f32)
    qrs = p["queries"].astype(f32)
    B = vision_feats.shape[0]
    qrs = jnp.broadcast_to(qrs, (B,) + qrs.shape[1:])
    q = qrs @ p["wq"].astype(f32)
    k = (x + pos) @ p["wk"].astype(f32)
    v = x @ p["wv"].astype(f32)
    E = q.shape[-1]
    hd = E // num_heads
    qh = q.reshape(B, -1, num_heads, hd).transpose(0, 2, 1, 3)
    kh = k.reshape(B, -1, num_heads, hd).transpose(0, 2, 1, 3)
    vh = v.reshape(B, -1, num_heads, hd).transpose(0, 2, 1, 3)
    s = jnp.einsum("bhqd,bhkd->bhqk", qh, kh) / np.sqrt(hd)
    pattn = jax.nn.softmax(s, axis=-1)
    o = jnp.einsum("bhqk,bhkd->bhqd", pattn, vh).transpose(0, 2, 1, 3).reshape(B, -1, E)
    o = o @ p["wo"].astype(f32)
    tok = qrs + o
    tok = _layernorm(tok, p["gpn"].astype(f32), p["bpn"].astype(f32), 1e-4)
    h1 = tok @ p["w1"].astype(f32) + p["b1"].astype(f32)
    h1 = h1 * jax.nn.sigmoid(h1)
    tok = tok + (h1 @ p["w2"].astype(f32) + p["b2"].astype(f32))
    return _layernorm(tok, p["gmn"].astype(f32), p["bmn"].astype(f32), 1e-4)


if __name__ == "__main__":
    # Small synthetic config consistent with the module's shapes:
    #   embed_dim E=32, num_heads=4 (head_dim=8), num_queries Q=8,
    #   vision hidden Dv=48, grid_size=4 -> S = 4*4 + 1(cls) = 17, batch B=2.
    B, S, Dv, E, Q, H = 2, 17, 48, 32, 8, 4
    grid_size = 4

    key = jax.random.PRNGKey(0)
    ks = jax.random.split(key, 16)
    bf16 = jnp.bfloat16

    def rnd(k, shape, scale=0.05):
        return (scale * jax.random.normal(k, shape, dtype=jnp.float32)).astype(bf16)

    params = {
        # vision_linear: Linear(Dv->E) + LayerNorm(E, eps=1e-5)
        "wvl": rnd(ks[0], (Dv, E)), "bvl": rnd(ks[1], (1, E)),
        "gvl": jnp.ones((1, E), bf16), "bln": jnp.zeros((1, E), bf16),
        # MultiheadAttention(E, heads=4, bias=False)
        "wq": rnd(ks[2], (E, E)), "wk": rnd(ks[3], (E, E)),
        "wv": rnd(ks[4], (E, E)), "wo": rnd(ks[5], (E, E)),
        # post_vision_norm (eps=1e-4)
        "gpn": jnp.ones((1, E), bf16), "bpn": jnp.zeros((1, E), bf16),
        # vision_mlp: Linear(E->2E), SiLU, Linear(2E->E)
        "w1": rnd(ks[6], (E, 2 * E)), "b1": rnd(ks[7], (1, 2 * E)),
        "w2": rnd(ks[8], (2 * E, E)), "b2": rnd(ks[9], (1, E)),
        # vision_mlp_norm (eps=1e-4)
        "gmn": jnp.ones((1, E), bf16), "bmn": jnp.zeros((1, E), bf16),
        # learned queries (0.1 * randn) and frozen 2d sincos pos embed (+cls)
        "queries": (0.1 * jax.random.normal(ks[10], (1, Q, E), jnp.float32)).astype(bf16),
        "pos_embed": jnp.asarray(
            get_2d_sincos_pos_embed(E, grid_size, cls_token=True)
        )[None].astype(bf16),
    }

    # Input: CLIP vision hidden states (the frozen CLIP backbone itself is
    # external and not translated).  Shape (B, S, Dv).
    vision_feats = (0.5 * jax.random.normal(ks[11], (B, S, Dv), jnp.float32)).astype(bf16)

    # TODO(synk): the HuggingFace LLM, tokenizer, LoRA/PEFT adapters, CLIP backbone,
    # image processor and the cross-entropy loss of LVLM.forward/generate have no
    # in-kernel Pallas equivalent; only get_image_tokens (the custom adapter math)
    # is implemented here.

    out = lvlm_image_tokens(vision_feats, params, num_heads=H)
    out = jax.block_until_ready(out)

    ref = reference(vision_feats, params, num_heads=H)
    np.testing.assert_allclose(
        np.asarray(out, dtype=np.float32), np.asarray(ref, dtype=np.float32),
        atol=5e-2, rtol=5e-2,
    )
    print("KERNEL_OK")
</pallas_src>

<mosaic_0001>
module attributes {stable_mosaic.version = 11 : i64} {
  func.func @lvlm_image_tokens_kernel(%arg0: i32, %arg1: memref<34x48xbf16, #tpu.memory_space<vmem>>, %arg2: memref<4x8x8xbf16, #tpu.memory_space<vmem>>, %arg3: memref<16x32xf32, #tpu.memory_space<vmem>>, %arg4: memref<34x32xf32, #tpu.memory_space<vmem>>, %arg5: memref<48x32xbf16, #tpu.memory_space<vmem>>, %arg6: memref<32x64xbf16, #tpu.memory_space<vmem>>, %arg7: memref<32x32xbf16, #tpu.memory_space<vmem>>, %arg8: memref<32x64xbf16, #tpu.memory_space<vmem>>, %arg9: memref<64x32xbf16, #tpu.memory_space<vmem>>, %arg10: memref<8x32xf32, #tpu.memory_space<vmem>>, %arg11: memref<1x64xf32, #tpu.memory_space<vmem>>, %arg12: memref<16x32xbf16, #tpu.memory_space<vmem>>) attributes {dimension_semantics = [#tpu.dimension_semantics<parallel>], iteration_bounds = array<i64: 1>, scalar_prefetch = 0 : i64, scratch_operands = 0 : i64, tpu.core_type = #tpu.core_type<tc>, window_params = [{transform_indices = @transform_0, window_bounds = array<i64: 34, 48>}, {pipeline_mode = #tpu.pipeline_mode<synchronous>, transform_indices = @transform_1, window_bounds = array<i64: 4, 8, 8>}, {pipeline_mode = #tpu.pipeline_mode<synchronous>, transform_indices = @transform_2, window_bounds = array<i64: 16, 32>}, {pipeline_mode = #tpu.pipeline_mode<synchronous>, transform_indices = @transform_3, window_bounds = array<i64: 34, 32>}, {pipeline_mode = #tpu.pipeline_mode<synchronous>, transform_indices = @transform_4, window_bounds = array<i64: 48, 32>}, {pipeline_mode = #tpu.pipeline_mode<synchronous>, transform_indices = @transform_5, window_bounds = array<i64: 32, 64>}, {pipeline_mode = #tpu.pipeline_mode<synchronous>, transform_indices = @transform_6, window_bounds = array<i64: 32, 32>}, {pipeline_mode = #tpu.pipeline_mode<synchronous>, transform_indices = @transform_7, window_bounds = array<i64: 32, 64>}, {pipeline_mode = #tpu.pipeline_mode<synchronous>, transform_indices = @transform_8, window_bounds = array<i64: 64, 32>}, {pipeline_mode = #tpu.pipeline_mode<synchronous>, transform_indices = @transform_9, window_bounds = array<i64: 8, 32>}, {pipeline_mode = #tpu.pipeline_mode<synchronous>, transform_indices = @transform_10, window_bounds = array<i64: 1, 64>}, {transform_indices = @transform_11, window_bounds = array<i64: 16, 32>}]} {
    %c0 = arith.constant 0 : index
    %c0_0 = arith.constant 0 : index
    %0 = vector.load %arg10[%c0, %c0_0] : memref<8x32xf32, #tpu.memory_space<vmem>>, vector<8x32xf32>
    %1 = vector.extract_strided_slice %0 {offsets = [0, 0], sizes = [1, 32], strides = [1, 1]} : vector<8x32xf32> to vector<1x32xf32>
    %2 = vector.extract_strided_slice %0 {offsets = [1, 0], sizes = [1, 32], strides = [1, 1]} : vector<8x32xf32> to vector<1x32xf32>
    %3 = vector.extract_strided_slice %0 {offsets = [2, 0], sizes = [1, 32], strides = [1, 1]} : vector<8x32xf32> to vector<1x32xf32>
    %4 = vector.extract_strided_slice %0 {offsets = [3, 0], sizes = [1, 32], strides = [1, 1]} : vector<8x32xf32> to vector<1x32xf32>
    %5 = vector.extract_strided_slice %0 {offsets = [4, 0], sizes = [1, 32], strides = [1, 1]} : vector<8x32xf32> to vector<1x32xf32>
    %6 = vector.extract_strided_slice %0 {offsets = [5, 0], sizes = [1, 32], strides = [1, 1]} : vector<8x32xf32> to vector<1x32xf32>
    %7 = vector.extract_strided_slice %0 {offsets = [6, 0], sizes = [1, 32], strides = [1, 1]} : vector<8x32xf32> to vector<1x32xf32>
    %8 = vector.extract_strided_slice %0 {offsets = [7, 0], sizes = [1, 32], strides = [1, 1]} : vector<8x32xf32> to vector<1x32xf32>
    %c0_1 = arith.constant 0 : index
    %c0_2 = arith.constant 0 : index
    %9 = vector.load %arg1[%c0_1, %c0_2] : memref<34x48xbf16, #tpu.memory_space<vmem>>, vector<34x48xbf16>
    %c0_3 = arith.constant 0 : index
    %c0_4 = arith.constant 0 : index
    %10 = vector.load %arg5[%c0_3, %c0_4] : memref<48x32xbf16, #tpu.memory_space<vmem>>, vector<48x32xbf16>
    %cst = arith.constant dense<0.000000e+00> : vector<34x32xf32>
    %11 = tpu.matmul %9, %10, %cst {dimension_numbers = #tpu.dot_dimension_numbers<[1], [0], [0], [1], [0, 0, 1, 1], [], []>} : vector<34x48xbf16>, vector<48x32xbf16>, vector<34x32xf32> -> vector<34x32xf32>
    %12 = vector.broadcast %1 : vector<1x32xf32> to vector<34x32xf32>
    %13 = arith.addf %11, %12 : vector<34x32xf32>
    %cst_5 = arith.constant dense<0.000000e+00> : vector<34xf32>
    %14 = vector.multi_reduction <add>, %13, %cst_5 [1] : vector<34x32xf32> to vector<34xf32>
    %15 = vector.shape_cast %14 : vector<34xf32> to vector<34x1xf32>
    %cst_6 = arith.constant 3.200000e+01 : f32
    %16 = vector.broadcast %cst_6 : f32 to vector<34x1xf32>
    %17 = arith.divf %15, %16 : vector<34x1xf32>
    %18 = vector.broadcast %17 : vector<34x1xf32> to vector<34x32xf32>
    %19 = arith.subf %13, %18 : vector<34x32xf32>
    %20 = arith.mulf %19, %19 : vector<34x32xf32>
    %cst_7 = arith.constant dense<0.000000e+00> : vector<34xf32>
    %21 = vector.multi_reduction <add>, %20, %cst_7 [1] : vector<34x32xf32> to vector<34xf32>
    %22 = vector.shape_cast %21 : vector<34xf32> to vector<34x1xf32>
    %cst_8 = arith.constant 3.200000e+01 : f32
    %23 = vector.broadcast %cst_8 : f32 to vector<34x1xf32>
    %24 = arith.divf %22, %23 : vector<34x1xf32>
    %25 = vector.broadcast %17 : vector<34x1xf32> to vector<34x32xf32>
    %26 = arith.subf %13, %25 : vector<34x32xf32>
    %cst_9 = arith.constant 9.99999974E-6 : f32
    %27 = vector.broadcast %cst_9 : f32 to vector<34x1xf32>
    %28 = arith.addf %24, %27 : vector<34x1xf32>
    %29 = math.rsqrt %28 : vector<34x1xf32>
    %30 = vector.broadcast %29 : vector<34x1xf32> to vector<34x32xf32>
    %31 = arith.mulf %26, %30 : vector<34x32xf32>
    %32 = vector.broadcast %2 : vector<1x32xf32> to vector<34x32xf32>
    %33 = arith.mulf %31, %32 : vector<34x32xf32>
    %34 = vector.broadcast %3 : vector<1x32xf32> to vector<34x32xf32>
    %35 = arith.addf %33, %34 : vector<34x32xf32>
    %36 = arith.truncf %35 : vector<34x32xf32> to vector<34x32xbf16>
    %c0_10 = arith.constant 0 : index
    %c0_11 = arith.constant 0 : index
    %37 = vector.load %arg6[%c0_10, %c0_11] : memref<32x64xbf16, #tpu.memory_space<vmem>>, vector<32x64xbf16>
    %cst_12 = arith.constant dense<0.000000e+00> : vector<34x64xf32>
    %38 = tpu.matmul %36, %37, %cst_12 {dimension_numbers = #tpu.dot_dimension_numbers<[1], [0], [0], [1], [0, 0, 1, 1], [], []>} : vector<34x32xbf16>, vector<32x64xbf16>, vector<34x64xf32> -> vector<34x64xf32>
    %39 = vector.extract_strided_slice %38 {offsets = [0, 0], sizes = [34, 32], strides = [1, 1]} : vector<34x64xf32> to vector<34x32xf32>
    %c0_13 = arith.constant 0 : index
    %c0_14 = arith.constant 0 : index
    %40 = vector.load %arg4[%c0_13, %c0_14] : memref<34x32xf32, #tpu.memory_space<vmem>>, vector<34x32xf32>
    %41 = arith.addf %39, %40 : vector<34x32xf32>
    %42 = arith.truncf %41 : vector<34x32xf32> to vector<34x32xbf16>
    %43 = vector.extract_strided_slice %38 {offsets = [0, 32], sizes = [34, 32], strides = [1, 1]} : vector<34x64xf32> to vector<34x32xf32>
    %44 = arith.truncf %43 : vector<34x32xf32> to vector<34x32xbf16>
    %c0_15 = arith.constant 0 : index
    %c0_16 = arith.constant 0 : index
    %c0_17 = arith.constant 0 : index
    %45 = vector.load %arg2[%c0_15, %c0_16, %c0_17] : memref<4x8x8xbf16, #tpu.memory_space<vmem>>, vector<4x8x8xbf16>
    %46 = vector.extract_strided_slice %45 {offsets = [0, 0, 0], sizes = [1, 8, 8], strides = [1, 1, 1]} : vector<4x8x8xbf16> to vector<1x8x8xbf16>
    %47 = vector.shape_cast %46 : vector<1x8x8xbf16> to vector<8x8xbf16>
    %48 = vector.extract_strided_slice %42 {offsets = [0, 0], sizes = [34, 8], strides = [1, 1]} : vector<34x32xbf16> to vector<34x8xbf16>
    %cst_18 = arith.constant dense<0.000000e+00> : vector<8x34xf32>
    %49 = tpu.matmul %47, %48, %cst_18 {dimension_numbers = #tpu.dot_dimension_numbers<[1], [1], [0], [0], [0, 0, 1, 0], [], []>} : vector<8x8xbf16>, vector<34x8xbf16>, vector<8x34xf32> -> vector<8x34xf32>
    %50 = vector.extract_strided_slice %45 {offsets = [1, 0, 0], sizes = [1, 8, 8], strides = [1, 1, 1]} : vector<4x8x8xbf16> to vector<1x8x8xbf16>
    %51 = vector.shape_cast %50 : vector<1x8x8xbf16> to vector<8x8xbf16>
    %52 = vector.extract_strided_slice %42 {offsets = [0, 8], sizes = [34, 8], strides = [1, 1]} : vector<34x32xbf16> to vector<34x8xbf16>
    %cst_19 = arith.constant dense<0.000000e+00> : vector<8x34xf32>
    %53 = tpu.matmul %51, %52, %cst_19 {dimension_numbers = #tpu.dot_dimension_numbers<[1], [1], [0], [0], [0, 0, 1, 0], [], []>} : vector<8x8xbf16>, vector<34x8xbf16>, vector<8x34xf32> -> vector<8x34xf32>
    %54 = vector.extract_strided_slice %45 {offsets = [2, 0, 0], sizes = [1, 8, 8], strides = [1, 1, 1]} : vector<4x8x8xbf16> to vector<1x8x8xbf16>
    %55 = vector.shape_cast %54 : vector<1x8x8xbf16> to vector<8x8xbf16>
    %56 = vector.extract_strided_slice %42 {offsets = [0, 16], sizes = [34, 8], strides = [1, 1]} : vector<34x32xbf16> to vector<34x8xbf16>
    %cst_20 = arith.constant dense<0.000000e+00> : vector<8x34xf32>
    %57 = tpu.matmul %55, %56, %cst_20 {dimension_numbers = #tpu.dot_dimension_numbers<[1], [1], [0], [0], [0, 0, 1, 0], [], []>} : vector<8x8xbf16>, vector<34x8xbf16>, vector<8x34xf32> -> vector<8x34xf32>
    %58 = vector.extract_strided_slice %45 {offsets = [3, 0, 0], sizes = [1, 8, 8], strides = [1, 1, 1]} : vector<4x8x8xbf16> to vector<1x8x8xbf16>
    %59 = vector.shape_cast %58 : vector<1x8x8xbf16> to vector<8x8xbf16>
    %60 = vector.extract_strided_slice %42 {offsets = [0, 24], sizes = [34, 8], strides = [1, 1]} : vector<34x32xbf16> to vector<34x8xbf16>
    %cst_21 = arith.constant dense<0.000000e+00> : vector<8x34xf32>
    %61 = tpu.matmul %59, %60, %cst_21 {dimension_numbers = #tpu.dot_dimension_numbers<[1], [1], [0], [0], [0, 0, 1, 0], [], []>} : vector<8x8xbf16>, vector<34x8xbf16>, vector<8x34xf32> -> vector<8x34xf32>
    %62 = tpu.concatenate %49, %53, %57, %61 in 0 : vector<8x34xf32>, vector<8x34xf32>, vector<8x34xf32>, vector<8x34xf32> -> vector<32x34xf32>
    %63 = vector.extract_strided_slice %62 {offsets = [0, 0], sizes = [32, 17], strides = [1, 1]} : vector<32x34xf32> to vector<32x17xf32>
    %cst_22 = arith.constant dense<0xFF800000> : vector<32xf32>
    %64 = vector.multi_reduction <maximumf>, %63, %cst_22 [1] : vector<32x17xf32> to vector<32xf32>
    %65 = vector.shape_cast %64 : vector<32xf32> to vector<32x1xf32>
    %66 = vector.broadcast %65 : vector<32x1xf32> to vector<32x17xf32>
    %67 = arith.subf %63, %66 : vector<32x17xf32>
    %68 = math.exp %67 : vector<32x17xf32>
    %cst_23 = arith.constant dense<0.000000e+00> : vector<32xf32>
    %69 = vector.multi_reduction <add>, %68, %cst_23 [1] : vector<32x17xf32> to vector<32xf32>
    %70 = vector.shape_cast %69 : vector<32xf32> to vector<32x1xf32>
    %71 = tpu.reciprocal %70 {approx = true} : vector<32x1xf32> -> vector<32x1xf32>
    %72 = vector.broadcast %71 : vector<32x1xf32> to vector<32x17xf32>
    %73 = arith.mulf %68, %72 : vector<32x17xf32>
    %74 = arith.truncf %73 : vector<32x17xf32> to vector<32x17xbf16>
    %75 = vector.extract_strided_slice %74 {offsets = [0, 0], sizes = [8, 17], strides = [1, 1]} : vector<32x17xbf16> to vector<8x17xbf16>
    %76 = vector.extract_strided_slice %44 {offsets = [0, 0], sizes = [17, 8], strides = [1, 1]} : vector<34x32xbf16> to vector<17x8xbf16>
    %cst_24 = arith.constant dense<0.000000e+00> : vector<8x8xf32>
    %77 = tpu.matmul %75, %76, %cst_24 {dimension_numbers = #tpu.dot_dimension_numbers<[1], [0], [0], [1], [0, 0, 1, 1], [], []>} : vector<8x17xbf16>, vector<17x8xbf16>, vector<8x8xf32> -> vector<8x8xf32>
    %78 = vector.extract_strided_slice %74 {offsets = [8, 0], sizes = [8, 17], strides = [1, 1]} : vector<32x17xbf16> to vector<8x17xbf16>
    %79 = vector.extract_strided_slice %44 {offsets = [0, 8], sizes = [17, 8], strides = [1, 1]} : vector<34x32xbf16> to vector<17x8xbf16>
    %cst_25 = arith.constant dense<0.000000e+00> : vector<8x8xf32>
    %80 = tpu.matmul %78, %79, %cst_25 {dimension_numbers = #tpu.dot_dimension_numbers<[1], [0], [0], [1], [0, 0, 1, 1], [], []>} : vector<8x17xbf16>, vector<17x8xbf16>, vector<8x8xf32> -> vector<8x8xf32>
    %81 = vector.extract_strided_slice %74 {offsets = [16, 0], sizes = [8, 17], strides = [1, 1]} : vector<32x17xbf16> to vector<8x17xbf16>
    %82 = vector.extract_strided_slice %44 {offsets = [0, 16], sizes = [17, 8], strides = [1, 1]} : vector<34x32xbf16> to vector<17x8xbf16>
    %cst_26 = arith.constant dense<0.000000e+00> : vector<8x8xf32>
    %83 = tpu.matmul %81, %82, %cst_26 {dimension_numbers = #tpu.dot_dimension_numbers<[1], [0], [0], [1], [0, 0, 1, 1], [], []>} : vector<8x17xbf16>, vector<17x8xbf16>, vector<8x8xf32> -> vector<8x8xf32>
    %84 = vector.extract_strided_slice %74 {offsets = [24, 0], sizes = [8, 17], strides = [1, 1]} : vector<32x17xbf16> to vector<8x17xbf16>
    %85 = vector.extract_strided_slice %44 {offsets = [0, 24], sizes = [17, 8], strides = [1, 1]} : vector<34x32xbf16> to vector<17x8xbf16>
    %cst_27 = arith.constant dense<0.000000e+00> : vector<8x8xf32>
    %86 = tpu.matmul %84, %85, %cst_27 {dimension_numbers = #tpu.dot_dimension_numbers<[1], [0], [0], [1], [0, 0, 1, 1], [], []>} : vector<8x17xbf16>, vector<17x8xbf16>, vector<8x8xf32> -> vector<8x8xf32>
    %87 = tpu.concatenate %77, %80, %83, %86 in 1 : vector<8x8xf32>, vector<8x8xf32>, vector<8x8xf32>, vector<8x8xf32> -> vector<8x32xf32>
    %88 = vector.extract_strided_slice %62 {offsets = [0, 17], sizes = [32, 17], strides = [1, 1]} : vector<32x34xf32> to vector<32x17xf32>
    %cst_28 = arith.constant dense<0xFF800000> : vector<32xf32>
    %89 = vector.multi_reduction <maximumf>, %88, %cst_28 [1] : vector<32x17xf32> to vector<32xf32>
    %90 = vector.shape_cast %89 : vector<32xf32> to vector<32x1xf32>
    %91 = vector.broadcast %90 : vector<32x1xf32> to vector<32x17xf32>
    %92 = arith.subf %88, %91 : vector<32x17xf32>
    %93 = math.exp %92 : vector<32x17xf32>
    %cst_29 = arith.constant dense<0.000000e+00> : vector<32xf32>
    %94 = vector.multi_reduction <add>, %93, %cst_29 [1] : vector<32x17xf32> to vector<32xf32>
    %95 = vector.shape_cast %94 : vector<32xf32> to vector<32x1xf32>
    %96 = tpu.reciprocal %95 {approx = true} : vector<32x1xf32> -> vector<32x1xf32>
    %97 = vector.broadcast %96 : vector<32x1xf32> to vector<32x17xf32>
    %98 = arith.mulf %93, %97 : vector<32x17xf32>
    %99 = arith.truncf %98 : vector<32x17xf32> to vector<32x17xbf16>
    %100 = vector.extract_strided_slice %99 {offsets = [0, 0], sizes = [8, 17], strides = [1, 1]} : vector<32x17xbf16> to vector<8x17xbf16>
    %101 = vector.extract_strided_slice %44 {offsets = [17, 0], sizes = [17, 8], strides = [1, 1]} : vector<34x32xbf16> to vector<17x8xbf16>
    %cst_30 = arith.constant dense<0.000000e+00> : vector<8x8xf32>
    %102 = tpu.matmul %100, %101, %cst_30 {dimension_numbers = #tpu.dot_dimension_numbers<[1], [0], [0], [1], [0, 0, 1, 1], [], []>} : vector<8x17xbf16>, vector<17x8xbf16>, vector<8x8xf32> -> vector<8x8xf32>
    %103 = vector.extract_strided_slice %99 {offsets = [8, 0], sizes = [8, 17], strides = [1, 1]} : vector<32x17xbf16> to vector<8x17xbf16>
    %104 = vector.extract_strided_slice %44 {offsets = [17, 8], sizes = [17, 8], strides = [1, 1]} : vector<34x32xbf16> to vector<17x8xbf16>
    %cst_31 = arith.constant dense<0.000000e+00> : vector<8x8xf32>
    %105 = tpu.matmul %103, %104, %cst_31 {dimension_numbers = #tpu.dot_dimension_numbers<[1], [0], [0], [1], [0, 0, 1, 1], [], []>} : vector<8x17xbf16>, vector<17x8xbf16>, vector<8x8xf32> -> vector<8x8xf32>
    %106 = vector.extract_strided_slice %99 {offsets = [16, 0], sizes = [8, 17], strides = [1, 1]} : vector<32x17xbf16> to vector<8x17xbf16>
    %107 = vector.extract_strided_slice %44 {offsets = [17, 16], sizes = [17, 8], strides = [1, 1]} : vector<34x32xbf16> to vector<17x8xbf16>
    %cst_32 = arith.constant dense<0.000000e+00> : vector<8x8xf32>
    %108 = tpu.matmul %106, %107, %cst_32 {dimension_numbers = #tpu.dot_dimension_numbers<[1], [0], [0], [1], [0, 0, 1, 1], [], []>} : vector<8x17xbf16>, vector<17x8xbf16>, vector<8x8xf32> -> vector<8x8xf32>
    %109 = vector.extract_strided_slice %99 {offsets = [24, 0], sizes = [8, 17], strides = [1, 1]} : vector<32x17xbf16> to vector<8x17xbf16>
    %110 = vector.extract_strided_slice %44 {offsets = [17, 24], sizes = [17, 8], strides = [1, 1]} : vector<34x32xbf16> to vector<17x8xbf16>
    %cst_33 = arith.constant dense<0.000000e+00> : vector<8x8xf32>
    %111 = tpu.matmul %109, %110, %cst_33 {dimension_numbers = #tpu.dot_dimension_numbers<[1], [0], [0], [1], [0, 0, 1, 1], [], []>} : vector<8x17xbf16>, vector<17x8xbf16>, vector<8x8xf32> -> vector<8x8xf32>
    %112 = tpu.concatenate %102, %105, %108, %111 in 1 : vector<8x8xf32>, vector<8x8xf32>, vector<8x8xf32>, vector<8x8xf32> -> vector<8x32xf32>
    %113 = tpu.concatenate %87, %112 in 0 : vector<8x32xf32>, vector<8x32xf32> -> vector<16x32xf32>
    %114 = arith.truncf %113 : vector<16x32xf32> to vector<16x32xbf16>
    %c0_34 = arith.constant 0 : index
    %c0_35 = arith.constant 0 : index
    %115 = vector.load %arg7[%c0_34, %c0_35] : memref<32x32xbf16, #tpu.memory_space<vmem>>, vector<32x32xbf16>
    %cst_36 = arith.constant dense<0.000000e+00> : vector<16x32xf32>
    %116 = tpu.matmul %114, %115, %cst_36 {dimension_numbers = #tpu.dot_dimension_numbers<[1], [0], [0], [1], [0, 0, 1, 1], [], []>} : vector<16x32xbf16>, vector<32x32xbf16>, vector<16x32xf32> -> vector<16x32xf32>
    %c0_37 = arith.constant 0 : index
    %c0_38 = arith.constant 0 : index
    %117 = vector.load %arg3[%c0_37, %c0_38] : memref<16x32xf32, #tpu.memory_space<vmem>>, vector<16x32xf32>
    %118 = arith.addf %117, %116 : vector<16x32xf32>
    %cst_39 = arith.constant dense<0.000000e+00> : vector<16xf32>
    %119 = vector.multi_reduction <add>, %118, %cst_39 [1] : vector<16x32xf32> to vector<16xf32>
    %120 = vector.shape_cast %119 : vector<16xf32> to vector<16x1xf32>
    %cst_40 = arith.constant 3.200000e+01 : f32
    %121 = vector.broadcast %cst_40 : f32 to vector<16x1xf32>
    %122 = arith.divf %120, %121 : vector<16x1xf32>
    %123 = vector.broadcast %122 : vector<16x1xf32> to vector<16x32xf32>
    %124 = arith.subf %118, %123 : vector<16x32xf32>
    %125 = arith.mulf %124, %124 : vector<16x32xf32>
    %cst_41 = arith.constant dense<0.000000e+00> : vector<16xf32>
    %126 = vector.multi_reduction <add>, %125, %cst_41 [1] : vector<16x32xf32> to vector<16xf32>
    %127 = vector.shape_cast %126 : vector<16xf32> to vector<16x1xf32>
    %cst_42 = arith.constant 3.200000e+01 : f32
    %128 = vector.broadcast %cst_42 : f32 to vector<16x1xf32>
    %129 = arith.divf %127, %128 : vector<16x1xf32>
    %130 = vector.broadcast %122 : vector<16x1xf32> to vector<16x32xf32>
    %131 = arith.subf %118, %130 : vector<16x32xf32>
    %cst_43 = arith.constant 9.99999974E-5 : f32
    %132 = vector.broadcast %cst_43 : f32 to vector<16x1xf32>
    %133 = arith.addf %129, %132 : vector<16x1xf32>
    %134 = math.rsqrt %133 : vector<16x1xf32>
    %135 = vector.broadcast %134 : vector<16x1xf32> to vector<16x32xf32>
    %136 = arith.mulf %131, %135 : vector<16x32xf32>
    %137 = vector.broadcast %4 : vector<1x32xf32> to vector<16x32xf32>
    %138 = arith.mulf %136, %137 : vector<16x32xf32>
    %139 = vector.broadcast %5 : vector<1x32xf32> to vector<16x32xf32>
    %140 = arith.addf %138, %139 : vector<16x32xf32>
    %141 = arith.truncf %140 : vector<16x32xf32> to vector<16x32xbf16>
    %c0_44 = arith.constant 0 : index
    %c0_45 = arith.constant 0 : index
    %142 = vector.load %arg8[%c0_44, %c0_45] : memref<32x64xbf16, #tpu.memory_space<vmem>>, vector<32x64xbf16>
    %cst_46 = arith.constant dense<0.000000e+00> : vector<16x64xf32>
    %143 = tpu.matmul %141, %142, %cst_46 {dimension_numbers = #tpu.dot_dimension_numbers<[1], [0], [0], [1], [0, 0, 1, 1], [], []>} : vector<16x32xbf16>, vector<32x64xbf16>, vector<16x64xf32> -> vector<16x64xf32>
    %c0_47 = arith.constant 0 : index
    %c0_48 = arith.constant 0 : index
    %144 = vector.load %arg11[%c0_47, %c0_48] : memref<1x64xf32, #tpu.memory_space<vmem>>, vector<1x64xf32>
    %145 = vector.broadcast %144 : vector<1x64xf32> to vector<16x64xf32>
    %146 = arith.addf %143, %145 : vector<16x64xf32>
    %147 = arith.negf %146 : vector<16x64xf32>
    %148 = math.exp %147 : vector<16x64xf32>
    %cst_49 = arith.constant 1.000000e+00 : f32
    %149 = vector.broadcast %cst_49 : f32 to vector<16x64xf32>
    %150 = arith.addf %149, %148 : vector<16x64xf32>
    %151 = arith.divf %149, %150 : vector<16x64xf32>
    %152 = arith.mulf %146, %151 : vector<16x64xf32>
    %153 = arith.truncf %152 : vector<16x64xf32> to vector<16x64xbf16>
    %c0_50 = arith.constant 0 : index
    %c0_51 = arith.constant 0 : index
    %154 = vector.load %arg9[%c0_50, %c0_51] : memref<64x32xbf16, #tpu.memory_space<vmem>>, vector<64x32xbf16>
    %cst_52 = arith.constant dense<0.000000e+00> : vector<16x32xf32>
    %155 = tpu.matmul %153, %154, %cst_52 {dimension_numbers = #tpu.dot_dimension_numbers<[1], [0], [0], [1], [0, 0, 1, 1], [], []>} : vector<16x64xbf16>, vector<64x32xbf16>, vector<16x32xf32> -> vector<16x32xf32>
    %156 = vector.broadcast %6 : vector<1x32xf32> to vector<16x32xf32>
    %157 = arith.addf %155, %156 : vector<16x32xf32>
    %158 = arith.addf %140, %157 : vector<16x32xf32>
    %cst_53 = arith.constant dense<0.000000e+00> : vector<16xf32>
    %159 = vector.multi_reduction <add>, %158, %cst_53 [1] : vector<16x32xf32> to vector<16xf32>
    %160 = vector.shape_cast %159 : vector<16xf32> to vector<16x1xf32>
    %cst_54 = arith.constant 3.200000e+01 : f32
    %161 = vector.broadcast %cst_54 : f32 to vector<16x1xf32>
    %162 = arith.divf %160, %161 : vector<16x1xf32>
    %163 = vector.broadcast %162 : vector<16x1xf32> to vector<16x32xf32>
    %164 = arith.subf %158, %163 : vector<16x32xf32>
    %165 = arith.mulf %164, %164 : vector<16x32xf32>
    %cst_55 = arith.constant dense<0.000000e+00> : vector<16xf32>
    %166 = vector.multi_reduction <add>, %165, %cst_55 [1] : vector<16x32xf32> to vector<16xf32>
    %167 = vector.shape_cast %166 : vector<16xf32> to vector<16x1xf32>
    %cst_56 = arith.constant 3.200000e+01 : f32
    %168 = vector.broadcast %cst_56 : f32 to vector<16x1xf32>
    %169 = arith.divf %167, %168 : vector<16x1xf32>
    %170 = vector.broadcast %162 : vector<16x1xf32> to vector<16x32xf32>
    %171 = arith.subf %158, %170 : vector<16x32xf32>
    %cst_57 = arith.constant 9.99999974E-5 : f32
    %172 = vector.broadcast %cst_57 : f32 to vector<16x1xf32>
    %173 = arith.addf %169, %172 : vector<16x1xf32>
    %174 = math.rsqrt %173 : vector<16x1xf32>
    %175 = vector.broadcast %174 : vector<16x1xf32> to vector<16x32xf32>
    %176 = arith.mulf %171, %175 : vector<16x32xf32>
    %177 = vector.broadcast %7 : vector<1x32xf32> to vector<16x32xf32>
    %178 = arith.mulf %176, %177 : vector<16x32xf32>
    %179 = vector.broadcast %8 : vector<1x32xf32> to vector<16x32xf32>
    %180 = arith.addf %178, %179 : vector<16x32xf32>
    %181 = arith.truncf %180 : vector<16x32xf32> to vector<16x32xbf16>
    %c0_58 = arith.constant 0 : index
    %c0_59 = arith.constant 0 : index
    %182 = vector.load %arg12[%c0_58, %c0_59] : memref<16x32xbf16, #tpu.memory_space<vmem>>, vector<16x32xbf16>
    tpu.vector_store %arg12[%c0_58, %c0_59], %181 {strides = array<i32>} : memref<16x32xbf16, #tpu.memory_space<vmem>>, vector<16x32xbf16>,
    return
  }
  func.func @transform_0(%arg0: i32) -> (i32, i32) {
    %c0_i32 = arith.constant 0 : i32
    %c0_i32_0 = arith.constant 0 : i32
    return %arg0, %c0_i32 : i32, i32
  }
  func.func @transform_1(%arg0: i32) -> (i32, i32, i32) {
    %c0_i32 = arith.constant 0 : i32
    %c0_i32_0 = arith.constant 0 : i32
    %c0_i32_1 = arith.constant 0 : i32
    %c0_i32_2 = arith.constant 0 : i32
    return %c0_i32, %c0_i32_0, %c0_i32_1 : i32, i32, i32
  }
  func.func @transform_2(%arg0: i32) -> (i32, i32) {
    %c0_i32 = arith.constant 0 : i32
    %c0_i32_0 = arith.constant 0 : i32
    %c0_i32_1 = arith.constant 0 : i32
    return %c0_i32, %c0_i32_0 : i32, i32
  }
  func.func @transform_3(%arg0: i32) -> (i32, i32) {
    %c0_i32 = arith.constant 0 : i32
    %c0_i32_0 = arith.constant 0 : i32
    %c0_i32_1 = arith.constant 0 : i32
    return %c0_i32, %c0_i32_0 : i32, i32
  }
  func.func @transform_4(%arg0: i32) -> (i32, i32) {
    %c0_i32 = arith.constant 0 : i32
    %c0_i32_0 = arith.constant 0 : i32
    %c0_i32_1 = arith.constant 0 : i32
    return %c0_i32, %c0_i32_0 : i32, i32
  }
  func.func @transform_5(%arg0: i32) -> (i32, i32) {
    %c0_i32 = arith.constant 0 : i32
    %c0_i32_0 = arith.constant 0 : i32
    %c0_i32_1 = arith.constant 0 : i32
    return %c0_i32, %c0_i32_0 : i32, i32
  }
  func.func @transform_6(%arg0: i32) -> (i32, i32) {
    %c0_i32 = arith.constant 0 : i32
    %c0_i32_0 = arith.constant 0 : i32
    %c0_i32_1 = arith.constant 0 : i32
    return %c0_i32, %c0_i32_0 : i32, i32
  }
  func.func @transform_7(%arg0: i32) -> (i32, i32) {
    %c0_i32 = arith.constant 0 : i32
    %c0_i32_0 = arith.constant 0 : i32
    %c0_i32_1 = arith.constant 0 : i32
    return %c0_i32, %c0_i32_0 : i32, i32
  }
  func.func @transform_8(%arg0: i32) -> (i32, i32) {
    %c0_i32 = arith.constant 0 : i32
    %c0_i32_0 = arith.constant 0 : i32
    %c0_i32_1 = arith.constant 0 : i32
    return %c0_i32, %c0_i32_0 : i32, i32
  }
  func.func @transform_9(%arg0: i32) -> (i32, i32) {
    %c0_i32 = arith.constant 0 : i32
    %c0_i32_0 = arith.constant 0 : i32
    %c0_i32_1 = arith.constant 0 : i32
    return %c0_i32, %c0_i32_0 : i32, i32
  }
  func.func @transform_10(%arg0: i32) -> (i32, i32) {
    %c0_i32 = arith.constant 0 : i32
    %c0_i32_0 = arith.constant 0 : i32
    %c0_i32_1 = arith.constant 0 : i32
    return %c0_i32, %c0_i32_0 : i32, i32
  }
  func.func @transform_11(%arg0: i32) -> (i32, i32) {
    %c0_i32 = arith.constant 0 : i32
    %c0_i32_0 = arith.constant 0 : i32
    return %arg0, %c0_i32 : i32, i32
  }
}

</mosaic_0001>

<llo_original>
// kernel: tpu_custom_call.1
$region0: #{tpu_custom_call.1}
  #allocation0 [shape = 'u32[]', space=smem, size = 0x4, offset = 0x4, fixed_abs, tag = 'smem constant byte address 0x4 - core index']
  #allocation1 [shape = 'u32[144,128]{1,0:T(1,128)}', space=vmem, size = 0x12000, scoped, tag = 'internal scratch']
  %s0 = inlined_call_operand.vmem [shape: bf16[34,48], index: 0, kind: input, shape index: {}]
  %s1 = inlined_call_operand.vmem [shape: bf16[4,8,8], index: 1, kind: input, shape index: {}]
  %s2 = inlined_call_operand.vmem [shape: f32[16,32], index: 2, kind: input, shape index: {}]
  %s3 = inlined_call_operand.vmem [shape: f32[34,32], index: 3, kind: input, shape index: {}]
  %s4 = inlined_call_operand.vmem [shape: bf16[48,32], index: 4, kind: input, shape index: {}]
  %s5 = inlined_call_operand.vmem [shape: bf16[32,64], index: 5, kind: input, shape index: {}]
  %s6 = inlined_call_operand.vmem [shape: bf16[32,32], index: 6, kind: input, shape index: {}]
  %s7 = inlined_call_operand.vmem [shape: bf16[32,64], index: 7, kind: input, shape index: {}]
  %s8 = inlined_call_operand.vmem [shape: bf16[64,32], index: 8, kind: input, shape index: {}]
  %s9 = inlined_call_operand.vmem [shape: f32[8,32], index: 9, kind: input, shape index: {}]
  %s10 = inlined_call_operand.vmem [shape: f32[1,64], index: 10, kind: input, shape index: {}]
  %s11 = inlined_call_operand.hbm [shape: bf16[16,32], index: 11, kind: output, shape index: {}]
  %s12 = sld [smem:[#allocation0]]
  $region54: #{tpu_custom_call.1} parent=0
    _
  %s14 = ssub.s32 1, %s12
  %s15 = scalar_select 0, %s14, %s12
  $region1: #{tpu_custom_call.1} parent=0
    #allocation2 [shape = 'u8[4096]{0}', space=vmem, size = 0x1000, scoped, tag = 'output window, operand 0, single buffered']
    #allocation3 [shape = 's32[1]{0}', space=sflag, size = 0x4, scoped, tag = 'scoped memory for tpu_custom_call.1']
    %16 = vsyncpa [#allocation3], 0
    // Predicated region
    $region2: #{tpu_custom_call.1} parent=1 // pred_check
      _
    $region3: #{tpu_custom_call.1} parent=1 // pred_check_branch
      %18 = sbr.rel (0) target = $region5
    $region4: #{tpu_custom_call.1} parent=1 // pred_region
      _
    $region5: #{tpu_custom_call.1} parent=1 // pred_fallthru
      _
    // Predicated region
    $region6: #{tpu_custom_call.1} parent=1 // pred_check
      _
    $region7: #{tpu_custom_call.1} parent=1 // pred_check_branch
      %20 = sbr.rel (0) target = $region9
    $region8: #{tpu_custom_call.1} parent=1 // pred_region
      _
    $region9: #{tpu_custom_call.1} parent=1 // pred_fallthru
      _
    // Predicated region
    $region10: #{tpu_custom_call.1} parent=1 // pred_check
      _
    $region11: #{tpu_custom_call.1} parent=1 // pred_check_branch
      %22 = sbr.rel (0) target = $region13
    $region12: #{tpu_custom_call.1} parent=1 // pred_region
      _
    $region13: #{tpu_custom_call.1} parent=1 // pred_fallthru
      _
    // Predicated region
    $region14: #{tpu_custom_call.1} parent=1 // pred_check
      _
    $region15: #{tpu_custom_call.1} parent=1 // pred_check_branch
      %24 = sbr.rel (0) target = $region17
    $region16: #{tpu_custom_call.1} parent=1 // pred_region
      _
    $region17: #{tpu_custom_call.1} parent=1 // pred_fallthru
      _
    // Predicated region
    $region18: #{tpu_custom_call.1} parent=1 // pred_check
      _
    $region19: #{tpu_custom_call.1} parent=1 // pred_check_branch
      %26 = sbr.rel (0) target = $region21
    $region20: #{tpu_custom_call.1} parent=1 // pred_region
      _
    $region21: #{tpu_custom_call.1} parent=1 // pred_fallthru
      _
    // Predicated region
    $region22: #{tpu_custom_call.1} parent=1 // pred_check
      _
    $region23: #{tpu_custom_call.1} parent=1 // pred_check_branch
      %28 = sbr.rel (0) target = $region25
    $region24: #{tpu_custom_call.1} parent=1 // pred_region
      _
    $region25: #{tpu_custom_call.1} parent=1 // pred_fallthru
      _
    // Predicated region
    $region26: #{tpu_custom_call.1} parent=1 // pred_check
      _
    $region27: #{tpu_custom_call.1} parent=1 // pred_check_branch
      %30 = sbr.rel (0) target = $region29
    $region28: #{tpu_custom_call.1} parent=1 // pred_region
      _
    $region29: #{tpu_custom_call.1} parent=1 // pred_fallthru
      _
    // Predicated region
    $region30: #{tpu_custom_call.1} parent=1 // pred_check
      _
    $region31: #{tpu_custom_call.1} parent=1 // pred_check_branch
      %32 = sbr.rel (0) target = $region33
    $region32: #{tpu_custom_call.1} parent=1 // pred_region
      _
    $region33: #{tpu_custom_call.1} parent=1 // pred_fallthru
      _
    // Predicated region
    $region34: #{tpu_custom_call.1} parent=1 // pred_check
      _
    $region35: #{tpu_custom_call.1} parent=1 // pred_check_branch
      %34 = sbr.rel (0) target = $region37
    $region36: #{tpu_custom_call.1} parent=1 // pred_region
      _
    $region37: #{tpu_custom_call.1} parent=1 // pred_fallthru
      _
    // Predicated region
    $region38: #{tpu_custom_call.1} parent=1 // pred_check
      _
    $region39: #{tpu_custom_call.1} parent=1 // pred_check_branch
      %36 = sbr.rel (0) target = $region41
    $region40: #{tpu_custom_call.1} parent=1 // pred_region
      _
    $region41: #{tpu_custom_call.1} parent=1 // pred_fallthru
      _
    // Predicated region
    $region42: #{tpu_custom_call.1} parent=1 // pred_check
      _
    $region43: #{tpu_custom_call.1} parent=1 // pred_check_branch
      %38 = sbr.rel (0) target = $region45
    $region44: #{tpu_custom_call.1} parent=1 // pred_region
      _
    $region45: #{tpu_custom_call.1} parent=1 // pred_fallthru
      _
    %v40 = vld [vmem:[%s9] sm:$0xff]
    %v41 = vld [vmem:[%s0] sm:$0xf]
    %v42 = vld [vmem:[%s0 + $0x4] sm:$0xf]
    %v43 = vld [vmem:[%s0 + $0x8] sm:$0xf]
    %v44 = vld [vmem:[%s0 + $0xc] sm:$0xf]
    %v45 = vld [vmem:[%s0 + $0x10] sm:$0x1]
    %v46 = vld [vmem:[%s4] sm:$0xf]
    %v47 = vld [vmem:[%s4 + $0x4] sm:$0xf]
    %v48 = vld [vmem:[%s4 + $0x8] sm:$0xf]
    %v49 = vld [vmem:[%s4 + $0xc] sm:$0xf]
    %v50 = vld [vmem:[%s4 + $0x10] sm:$0xf]
    %v51 = vld [vmem:[%s4 + $0x14] sm:$0xf]
    %v52 = vlaneseq
    %v53 = vshrl.u32 %v52, 7
    %v54 = vsub.s32 0, %v53
    %v55 = vrot.slane %v40, %v54
    %v61 = vunpack.c.l.b16 %v41
    %v62 = vunpack.c.l.b16 %v42
    %v63 = vunpack.c.l.b16 %v43
    %v64 = vunpack.c.l.b16 %v44
    %v65 = vunpack.c.l.b16 %v45
    %v66 = vpack.c.b16 %v62, %v61
    %v67 = vpack.c.b16 %v64, %v63
    %v68 = vpack.c.b16 %v65, %v65
    %v75 = vunpack.c.l.b16 %v46
    %v76 = vunpack.c.l.b16 %v47
    %v77 = vunpack.c.l.b16 %v48
    %v78 = vunpack.c.l.b16 %v49
    %v79 = vunpack.c.l.b16 %v50
    %v80 = vunpack.c.l.b16 %v51
    %v81 = vpack.c.b16 %v76, %v75
    %v82 = vpack.c.b16 %v78, %v77
    %v83 = vpack.c.b16 %v80, %v79
    %vm87 = vcmask 392192
    %v89 = vsel %vm87, %v66, 0
    %v92 = vsel %vm87, %v67, 0
    %v95 = vsel %vm87, %v68, 0
    %97 = vmatprep.subr.bf16.mxu0 0
    %98 = vmatpush1.bf16.msra.mxu0 %v81
    %99 = vmatprep.subr.bf16.mxu0 0
    %100 = vmatpush1.bf16.msra.mxu0 %v82
    %101 = vmatprep.subr.bf16.mxu0 0
    %102 = vmatpush1.bf16.msra.mxu0 %v83
    %103 = vmatprep.subr.bf16.mxu0 0
    %104 = vmatpush1.bf16.msra.mxu0 0
    %105 = vmatprep.subr.bf16.mxu0 0
    %106 = vmatpush1.bf16.msra.mxu0 0
    %107 = vmatprep.subr.bf16.mxu0 0
    %108 = vmatpush1.bf16.msra.mxu0 0
    %109 = vmatprep.subr.bf16.mxu0 0
    %110 = vmatpush1.bf16.msra.mxu0 0
    %111 = vmatprep.subr.bf16.mxu0 0
    %112 = vmatpush1.bf16.msra.mxu0 0
    %113 = vmatprep.subr.bf16.mxu0 0
    %114 = vmatpush1.bf16.msra.mxu0 0
    %115 = vmatprep.subr.bf16.mxu0 0
    %116 = vmatpush1.bf16.msra.mxu0 0
    %117 = vmatprep.subr.bf16.mxu0 0
    %118 = vmatpush1.bf16.msra.mxu0 0
    %119 = vmatprep.subr.bf16.mxu0 0
    %120 = vmatpush1.bf16.msra.mxu0 0
    %121 = vmatprep.subr.bf16.mxu0 0
    %122 = vmatpush1.bf16.msra.mxu0 0
    %123 = vmatprep.subr.bf16.mxu0 0
    %124 = vmatpush1.bf16.msra.mxu0 0
    %125 = vmatprep.subr.bf16.mxu0 0
    %126 = vmatpush1.bf16.msra.mxu0 0
    %127 = vmatprep.subr.bf16.mxu0 0
    %128 = vmatpush1.bf16.msra.mxu0 0
    %129 = vmatprep.mubr.bf16.mxu0 0
    %130 = vmatmul.mubr.bf16.gmra.mrb[0].mxu0 %v89
    %v131 = vpop.f32.mrb[0].mxu0
    %v132 = vadd.f32 %v55, %v131
    %v133 = vpop.f32.mrb[0].mxu0
    %v134 = vpop.f32.mrb[0].mxu0
    %v135 = vadd.f32 %v55, %v134
    %v136 = vpop.f32.mrb[0].mxu0
    %137 = vmatprep.mubr.bf16.mxu0 0
    %138 = vmatmul.mubr.bf16.gmra.mrb[0].mxu0 %v92
    %v139 = vpop.f32.mrb[0].mxu0
    %v140 = vadd.f32 %v55, %v139
    %v141 = vpop.f32.mrb[0].mxu0
    %v142 = vpop.f32.mrb[0].mxu0
    %v143 = vadd.f32 %v55, %v142
    %v144 = vpop.f32.mrb[0].mxu0
    %145 = vmatprep.mubr.bf16.mxu0 0
    %146 = vmatmul.mubr.bf16.gmra.mrb[0].mxu0 %v95
    %v147 = vpop.f32.mrb[0].mxu0
    %v148 = vadd.f32 %v55, %v147
    %v149 = vpop.f32.mrb[0].mxu0
    %v150 = vpop.f32.mrb[0].mxu0
    %v151 = vpop.f32.mrb[0].mxu0
    %152 = vdwg.mxu0
    %vm153 = vcmask 261120
    %v154 = vsel %vm153, %v132, 0.0
    %155 = vadd.xlane.f32.xlu0 %v154
    %v156 = vpop.xlane.xlu0 %155
    %v157 = vsel %vm153, %v135, 0.0
    %158 = vadd.xlane.f32.xlu0 %v157
    %v159 = vpop.xlane.xlu0 %158
    %v160 = vsel %vm153, %v140, 0.0
    %161 = vadd.xlane.f32.xlu0 %v160
    %v162 = vpop.xlane.xlu0 %161
    %v163 = vsel %vm153, %v143, 0.0
    %164 = vadd.xlane.f32.xlu0 %v163
    %v165 = vpop.xlane.xlu0 %164
    %vm166 = vcmask 254976
    %v167 = vsel %vm166, %v148, 0.0
    %168 = vadd.xlane.f32.xlu0 %v167
    %v169 = vpop.xlane.xlu0 %168
    %v170 = vrcp.pop 32.0
    %v171 = vmul.f32 %v156, %v170
    %v172 = vmul.f32 %v159, %v170
    %v173 = vmul.f32 %v162, %v170
    %v174 = vmul.f32 %v165, %v170
    %v175 = vmul.f32 %v169, %v170
    %v176 = vsub.f32 %v132, %v171
    %v177 = vsub.f32 %v135, %v172
    %v178 = vsub.f32 %v140, %v173
    %v179 = vsub.f32 %v143, %v174
    %v180 = vsub.f32 %v148, %v175
    %v181 = vmul.f32 %v176, %v176
    %v182 = vmul.f32 %v177, %v177
    %v183 = vmul.f32 %v178, %v178
    %v184 = vmul.f32 %v179, %v179
    %v185 = vmul.f32 %v180, %v180
    %v186 = vsel %vm153, %v181, 0.0
    %187 = vadd.xlane.f32.xlu0 %v186
    %v188 = vpop.xlane.xlu0 %187
    %v189 = vsel %vm153, %v182, 0.0
    %190 = vadd.xlane.f32.xlu0 %v189
    %v191 = vpop.xlane.xlu0 %190
    %v192 = vsel %vm153, %v183, 0.0
    %193 = vadd.xlane.f32.xlu0 %v192
    %v194 = vpop.xlane.xlu0 %193
    %v195 = vsel %vm153, %v184, 0.0
    %196 = vadd.xlane.f32.xlu0 %v195
    %v197 = vpop.xlane.xlu0 %196
    %v198 = vsel %vm166, %v185, 0.0
    %199 = vadd.xlane.f32.xlu0 %v198
    %v200 = vpop.xlane.xlu0 %199
    %v201 = vmul.f32 %v188, %v170
    %v202 = vmul.f32 %v191, %v170
    %v203 = vmul.f32 %v194, %v170
    %v204 = vmul.f32 %v197, %v170
    %v205 = vmul.f32 %v200, %v170
    %v206 = vadd.f32 %v201, 1e-05
    %v207 = vadd.f32 %v202, 1e-05
    %v208 = vadd.f32 %v203, 1e-05
    %v209 = vadd.f32 %v204, 1e-05
    %v210 = vadd.f32 %v205, 1e-05
    %v211 = vrsqrt.pop %v206
    %v212 = vrsqrt.pop %v207
    %v213 = vrsqrt.pop %v208
    %v214 = vrsqrt.pop %v209
    %v215 = vrsqrt.pop %v210
    %v216 = vmul.f32 %v176, %v211
    %v217 = vmul.f32 %v177, %v212
    %v218 = vmul.f32 %v178, %v213
    %v219 = vmul.f32 %v179, %v214
    %v220 = vmul.f32 %v180, %v215
    %v221 = vlaneseq
    %v222 = vshrl.u32 %v221, 7
    %v223 = vsub.s32 1, %v222
    %v224 = vrot.slane %v40, %v223
    %v225 = vmul.f32 %v216, %v224
    %v226 = vmul.f32 %v217, %v224
    %v227 = vmul.f32 %v218, %v224
    %v228 = vmul.f32 %v219, %v224
    %v229 = vmul.f32 %v220, %v224
    %v230 = vlaneseq
    %v231 = vshrl.u32 %v230, 7
    %v232 = vsub.s32 2, %v231
    %v233 = vrot.slane %v40, %v232
    %v234 = vadd.f32 %v225, %v233
    %v235 = vadd.f32 %v226, %v233
    %v236 = vadd.f32 %v227, %v233
    %v237 = vadd.f32 %v228, %v233
    %v238 = vadd.f32 %v229, %v233
    %v239 = vpack.c.bf16 %v235, %v234
    %v240 = vpack.c.bf16 %v237, %v236
    %v241 = vpack.c.bf16 %v238, %v238
    %v242 = vld [vmem:[%s5] sm:$0xf]
    %v243 = vld [vmem:[%s5 + $0x4] sm:$0xf]
    %v244 = vld [vmem:[%s5 + $0x8] sm:$0xf]
    %v245 = vld [vmem:[%s5 + $0xc] sm:$0xf]
    %v250 = vunpack.c.l.b16 %v242
    %v251 = vunpack.c.l.b16 %v243
    %v252 = vunpack.c.l.b16 %v244
    %v253 = vunpack.c.l.b16 %v245
    %v254 = vpack.c.b16 %v251, %v250
    %v255 = vpack.c.b16 %v253, %v252
    %v259 = vsel %vm153, %v239, 0
    %v262 = vsel %vm153, %v240, 0
    %v265 = vsel %vm153, %v241, 0
    %267 = vmatprep.subr.bf16.mxu0 0
    %268 = vmatpush1.bf16.msra.mxu0 %v254
    %269 = vmatprep.subr.bf16.mxu0 0
    %270 = vmatpush1.bf16.msra.mxu0 %v255
    %271 = vmatprep.subr.bf16.mxu0 0
    %272 = vmatpush1.bf16.msra.mxu0 0
    %273 = vmatprep.subr.bf16.mxu0 0
    %274 = vmatpush1.bf16.msra.mxu0 0
    %275 = vmatprep.subr.bf16.mxu0 0
    %276 = vmatpush1.bf16.msra.mxu0 0
    %277 = vmatprep.subr.bf16.mxu0 0
    %278 = vmatpush1.bf16.msra.mxu0 0
    %279 = vmatprep.subr.bf16.mxu0 0
    %280 = vmatpush1.bf16.msra.mxu0 0
    %281 = vmatprep.subr.bf16.mxu0 0
    %282 = vmatpush1.bf16.msra.mxu0 0
    %283 = vmatprep.subr.bf16.mxu0 0
    %284 = vmatpush1.bf16.msra.mxu0 0
    %285 = vmatprep.subr.bf16.mxu0 0
    %286 = vmatpush1.bf16.msra.mxu0 0
    %287 = vmatprep.subr.bf16.mxu0 0
    %288 = vmatpush1.bf16.msra.mxu0 0
    %289 = vmatprep.subr.bf16.mxu0 0
    %290 = vmatpush1.bf16.msra.mxu0 0
    %291 = vmatprep.subr.bf16.mxu0 0
    %292 = vmatpush1.bf16.msra.mxu0 0
    %293 = vmatprep.subr.bf16.mxu0 0
    %294 = vmatpush1.bf16.msra.mxu0 0
    %295 = vmatprep.subr.bf16.mxu0 0
    %296 = vmatpush1.bf16.msra.mxu0 0
    %297 = vmatprep.subr.bf16.mxu0 0
    %298 = vmatpush1.bf16.msra.mxu0 0
    %299 = vmatprep.mubr.bf16.mxu0 0
    %300 = vmatmul.mubr.bf16.gmra.mrb[0].mxu0 %v259
    %v301 = vpop.f32.mrb[0].mxu0
    %v302 = vadd.f32 0.0, %v301
    %v303 = vpop.f32.mrb[0].mxu0
    %v304 = vpop.f32.mrb[0].mxu0
    %v305 = vadd.f32 0.0, %v304
    %v306 = vpop.f32.mrb[0].mxu0
    %307 = vmatprep.mubr.bf16.mxu0 0
    %308 = vmatmul.mubr.bf16.gmra.mrb[0].mxu0 %v262
    %v309 = vpop.f32.mrb[0].mxu0
    %v310 = vadd.f32 0.0, %v309
    %v311 = vpop.f32.mrb[0].mxu0
    %v312 = vpop.f32.mrb[0].mxu0
    %v313 = vadd.f32 0.0, %v312
    %v314 = vpop.f32.mrb[0].mxu0
    %315 = vmatprep.mubr.bf16.mxu0 0
    %316 = vmatmul.mubr.bf16.gmra.mrb[0].mxu0 %v265
    %v317 = vpop.f32.mrb[0].mxu0
    %v318 = vadd.f32 0.0, %v317
    %v319 = vpop.f32.mrb[0].mxu0
    %v320 = vpop.f32.mrb[0].mxu0
    %v321 = vpop.f32.mrb[0].mxu0
    %322 = vdwg.mxu0
    %v323 = vld [vmem:[%s3] sm:$0xff]
    %v324 = vld [vmem:[%s3 + $0x8] sm:$0xff]
    %v325 = vld [vmem:[%s3 + $0x10] sm:$0xff]
    %v326 = vld [vmem:[%s3 + $0x18] sm:$0xff]
    %v327 = vld [vmem:[%s3 + $0x20] sm:$0x3]
    %v328 = vadd.f32 %v302, %v323
    %v329 = vadd.f32 %v305, %v324
    %v330 = vadd.f32 %v310, %v325
    %v331 = vadd.f32 %v313, %v326
    %v332 = vadd.f32 %v318, %v327
    %v333 = vpack.c.bf16 %v329, %v328
    %v334 = vpack.c.bf16 %v331, %v330
    %v335 = vpack.c.bf16 %v332, %v332
    %v336 = vpack.c.bf16 %v305, %v302
    %v337 = vpack.c.bf16 %v313, %v310
    %v338 = vpack.c.bf16 %v318, %v318
    %v339 = vld [vmem:[%s1] sm:$0xf]
    %v340 = vld [vmem:[%s1 + $0x4] sm:$0xf]
    %v341 = vld [vmem:[%s1 + $0x8] sm:$0xf]
    %v342 = vld [vmem:[%s1 + $0xc] sm:$0xf]
    %vm343 = vcmask 64512
    %v345 = vsel %vm343, %v339, 0
    %v348 = vsel %vm343, %v333, 0
    %v351 = vsel %vm343, %v334, 0
    %v354 = vsel %vm343, %v335, 0
    %356 = vmatprep.subr.bf16.mxu0 0
    %357 = vmatpush1.bf16.xpose.msra.mxu0 %v348
    %358 = vmatprep.subr.bf16.mxu0 0
    %359 = vmatpush1.bf16.xpose.msra.mxu0 %v351
    %360 = vmatprep.subr.bf16.mxu0 0
    %361 = vmatpush1.bf16.xpose.msra.mxu0 %v354
    %362 = vmatprep.subr.bf16.mxu0 0
    %363 = vmatpush1.bf16.xpose.msra.mxu0 0
    %364 = vmatprep.subr.bf16.mxu0 0
    %365 = vmatpush1.bf16.xpose.msra.mxu0 0
    %366 = vmatprep.subr.bf16.mxu0 0
    %367 = vmatpush1.bf16.xpose.msra.mxu0 0
    %368 = vmatprep.subr.bf16.mxu0 0
    %369 = vmatpush1.bf16.xpose.msra.mxu0 0
    %370 = vmatprep.subr.bf16.mxu0 0
    %371 = vmatpush1.bf16.xpose.msra.mxu0 0
    %372 = vmatprep.subr.bf16.mxu0 0
    %373 = vmatpush1.bf16.xpose.msra.mxu0 0
    %374 = vmatprep.subr.bf16.mxu0 0
    %375 = vmatpush1.bf16.xpose.msra.mxu0 0
    %376 = vmatprep.subr.bf16.mxu0 0
    %377 = vmatpush1.bf16.xpose.msra.mxu0 0
    %378 = vmatprep.subr.bf16.mxu0 0
    %379 = vmatpush1.bf16.xpose.msra.mxu0 0
    %380 = vmatprep.subr.bf16.mxu0 0
    %381 = vmatpush1.bf16.xpose.msra.mxu0 0
    %382 = vmatprep.subr.bf16.mxu0 0
    %383 = vmatpush1.bf16.xpose.msra.mxu0 0
    %384 = vmatprep.subr.bf16.mxu0 0
    %385 = vmatpush1.bf16.xpose.msra.mxu0 0
    %386 = vmatprep.subr.bf16.mxu0 0
    %387 = vmatpush1.bf16.xpose.msra.mxu0 0
    %388 = vmatprep.mubr.bf16.mxu0 0
    %389 = vmatmul.mubr.bf16.gmra.mrb[0].mxu0 %v345
    %v390 = vpop.f32.mrb[0].mxu0
    %v391 = vadd.f32 0.0, %v390
    %v392 = vpop.f32.mrb[0].mxu0
    %v393 = vpop.f32.mrb[0].mxu0
    %v394 = vpop.f32.mrb[0].mxu0
    %395 = vdwg.mxu0
    %399 = vrot.lane.b32.xlu0 %v333, 120
    %v400 = vpop.permute.xlu0 %399
    %401 = vrot.lane.b32.xlu0 %v334, 120
    %v402 = vpop.permute.xlu0 %401
    %403 = vrot.lane.b32.xlu0 %v335, 120
    %v404 = vpop.permute.xlu0 %403
    %v406 = vsel %vm343, %v340, 0
    %v409 = vsel %vm343, %v400, 0
    %v412 = vsel %vm343, %v402, 0
    %v415 = vsel %vm343, %v404, 0
    %417 = vmatprep.subr.bf16.mxu0 0
    %418 = vmatpush1.bf16.xpose.msra.mxu0 %v409
    %419 = vmatprep.subr.bf16.mxu0 0
    %420 = vmatpush1.bf16.xpose.msra.mxu0 %v412
    %421 = vmatprep.subr.bf16.mxu0 0
    %422 = vmatpush1.bf16.xpose.msra.mxu0 %v415
    %423 = vmatprep.subr.bf16.mxu0 0
    %424 = vmatpush1.bf16.xpose.msra.mxu0 0
    %425 = vmatprep.subr.bf16.mxu0 0
    %426 = vmatpush1.bf16.xpose.msra.mxu0 0
    %427 = vmatprep.subr.bf16.mxu0 0
    %428 = vmatpush1.bf16.xpose.msra.mxu0 0
    %429 = vmatprep.subr.bf16.mxu0 0
    %430 = vmatpush1.bf16.xpose.msra.mxu0 0
    %431 = vmatprep.subr.bf16.mxu0 0
    %432 = vmatpush1.bf16.xpose.msra.mxu0 0
    %433 = vmatprep.subr.bf16.mxu0 0
    %434 = vmatpush1.bf16.xpose.msra.mxu0 0
    %435 = vmatprep.subr.bf16.mxu0 0
    %436 = vmatpush1.bf16.xpose.msra.mxu0 0
    %437 = vmatprep.subr.bf16.mxu0 0
    %438 = vmatpush1.bf16.xpose.msra.mxu0 0
    %439 = vmatprep.subr.bf16.mxu0 0
    %440 = vmatpush1.bf16.xpose.msra.mxu0 0
    %441 = vmatprep.subr.bf16.mxu0 0
    %442 = vmatpush1.bf16.xpose.msra.mxu0 0
    %443 = vmatprep.subr.bf16.mxu0 0
    %444 = vmatpush1.bf16.xpose.msra.mxu0 0
    %445 = vmatprep.subr.bf16.mxu0 0
    %446 = vmatpush1.bf16.xpose.msra.mxu0 0
    %447 = vmatprep.subr.bf16.mxu0 0
    %448 = vmatpush1.bf16.xpose.msra.mxu0 0
    %449 = vmatprep.mubr.bf16.mxu0 0
    %450 = vmatmul.mubr.bf16.gmra.mrb[0].mxu0 %v406
    %v451 = vpop.f32.mrb[0].mxu0
    %v452 = vadd.f32 0.0, %v451
    %v453 = vpop.f32.mrb[0].mxu0
    %v454 = vpop.f32.mrb[0].mxu0
    %v455 = vpop.f32.mrb[0].mxu0
    %456 = vdwg.mxu0
    %457 = vrot.lane.b32.xlu0 %v333, 112
    %v458 = vpop.permute.xlu0 %457
    %459 = vrot.lane.b32.xlu0 %v334, 112
    %v460 = vpop.permute.xlu0 %459
    %461 = vrot.lane.b32.xlu0 %v335, 112
    %v462 = vpop.permute.xlu0 %461
    %v464 = vsel %vm343, %v341, 0
    %v467 = vsel %vm343, %v458, 0
    %v470 = vsel %vm343, %v460, 0
    %v473 = vsel %vm343, %v462, 0
    %475 = vmatprep.subr.bf16.mxu0 0
    %476 = vmatpush1.bf16.xpose.msra.mxu0 %v467
    %477 = vmatprep.subr.bf16.mxu0 0
    %478 = vmatpush1.bf16.xpose.msra.mxu0 %v470
    %479 = vmatprep.subr.bf16.mxu0 0
    %480 = vmatpush1.bf16.xpose.msra.mxu0 %v473
    %481 = vmatprep.subr.bf16.mxu0 0
    %482 = vmatpush1.bf16.xpose.msra.mxu0 0
    %483 = vmatprep.subr.bf16.mxu0 0
    %484 = vmatpush1.bf16.xpose.msra.mxu0 0
    %485 = vmatprep.subr.bf16.mxu0 0
    %486 = vmatpush1.bf16.xpose.msra.mxu0 0
    %487 = vmatprep.subr.bf16.mxu0 0
    %488 = vmatpush1.bf16.xpose.msra.mxu0 0
    %489 = vmatprep.subr.bf16.mxu0 0
    %490 = vmatpush1.bf16.xpose.msra.mxu0 0
    %491 = vmatprep.subr.bf16.mxu0 0
    %492 = vmatpush1.bf16.xpose.msra.mxu0 0
    %493 = vmatprep.subr.bf16.mxu0 0
    %494 = vmatpush1.bf16.xpose.msra.mxu0 0
    %495 = vmatprep.subr.bf16.mxu0 0
    %496 = vmatpush1.bf16.xpose.msra.mxu0 0
    %497 = vmatprep.subr.bf16.mxu0 0
    %498 = vmatpush1.bf16.xpose.msra.mxu0 0
    %499 = vmatprep.subr.bf16.mxu0 0
    %500 = vmatpush1.bf16.xpose.msra.mxu0 0
    %501 = vmatprep.subr.bf16.mxu0 0
    %502 = vmatpush1.bf16.xpose.msra.mxu0 0
    %503 = vmatprep.subr.bf16.mxu0 0
    %504 = vmatpush1.bf16.xpose.msra.mxu0 0
    %505 = vmatprep.subr.bf16.mxu0 0
    %506 = vmatpush1.bf16.xpose.msra.mxu0 0
    %507 = vmatprep.mubr.bf16.mxu0 0
    %508 = vmatmul.mubr.bf16.gmra.mrb[0].mxu0 %v464
    %v509 = vpop.f32.mrb[0].mxu0
    %v510 = vadd.f32 0.0, %v509
    %v511 = vpop.f32.mrb[0].mxu0
    %v512 = vpop.f32.mrb[0].mxu0
    %v513 = vpop.f32.mrb[0].mxu0
    %514 = vdwg.mxu0
    %515 = vrot.lane.b32.xlu0 %v333, 104
    %v516 = vpop.permute.xlu0 %515
    %517 = vrot.lane.b32.xlu0 %v334, 104
    %v518 = vpop.permute.xlu0 %517
    %519 = vrot.lane.b32.xlu0 %v335, 104
    %v520 = vpop.permute.xlu0 %519
    %v522 = vsel %vm343, %v342, 0
    %v525 = vsel %vm343, %v516, 0
    %v528 = vsel %vm343, %v518, 0
    %v531 = vsel %vm343, %v520, 0
    %533 = vmatprep.subr.bf16.mxu0 0
    %534 = vmatpush1.bf16.xpose.msra.mxu0 %v525
    %535 = vmatprep.subr.bf16.mxu0 0
    %536 = vmatpush1.bf16.xpose.msra.mxu0 %v528
    %537 = vmatprep.subr.bf16.mxu0 0
    %538 = vmatpush1.bf16.xpose.msra.mxu0 %v531
    %539 = vmatprep.subr.bf16.mxu0 0
    %540 = vmatpush1.bf16.xpose.msra.mxu0 0
    %541 = vmatprep.subr.bf16.mxu0 0
    %542 = vmatpush1.bf16.xpose.msra.mxu0 0
    %543 = vmatprep.subr.bf16.mxu0 0
    %544 = vmatpush1.bf16.xpose.msra.mxu0 0
    %545 = vmatprep.subr.bf16.mxu0 0
    %546 = vmatpush1.bf16.xpose.msra.mxu0 0
    %547 = vmatprep.subr.bf16.mxu0 0
    %548 = vmatpush1.bf16.xpose.msra.mxu0 0
    %549 = vmatprep.subr.bf16.mxu0 0
    %550 = vmatpush1.bf16.xpose.msra.mxu0 0
    %551 = vmatprep.subr.bf16.mxu0 0
    %552 = vmatpush1.bf16.xpose.msra.mxu0 0
    %553 = vmatprep.subr.bf16.mxu0 0
    %554 = vmatpush1.bf16.xpose.msra.mxu0 0
    %555 = vmatprep.subr.bf16.mxu0 0
    %556 = vmatpush1.bf16.xpose.msra.mxu0 0
    %557 = vmatprep.subr.bf16.mxu0 0
    %558 = vmatpush1.bf16.xpose.msra.mxu0 0
    %559 = vmatprep.subr.bf16.mxu0 0
    %560 = vmatpush1.bf16.xpose.msra.mxu0 0
    %561 = vmatprep.subr.bf16.mxu0 0
    %562 = vmatpush1.bf16.xpose.msra.mxu0 0
    %563 = vmatprep.subr.bf16.mxu0 0
    %564 = vmatpush1.bf16.xpose.msra.mxu0 0
    %565 = vmatprep.mubr.bf16.mxu0 0
    %566 = vmatmul.mubr.bf16.gmra.mrb[0].mxu0 %v522
    %v567 = vpop.f32.mrb[0].mxu0
    %v568 = vadd.f32 0.0, %v567
    %v569 = vpop.f32.mrb[0].mxu0
    %v570 = vpop.f32.mrb[0].mxu0
    %v571 = vpop.f32.mrb[0].mxu0
    %572 = vdwg.mxu0
    %vm573 = vcmask 138240
    %v574 = vsel %vm573, %v391, -inf
    %575 = vmax.xlane.f32.xlu0 %v574
    %v576 = vpop.xlane.xlu0 %575
    %v577 = vsel %vm573, %v452, -inf
    %578 = vmax.xlane.f32.xlu0 %v577
    %v579 = vpop.xlane.xlu0 %578
    %v580 = vsel %vm573, %v510, -inf
    %581 = vmax.xlane.f32.xlu0 %v580
    %v582 = vpop.xlane.xlu0 %581
    %v583 = vsel %vm573, %v568, -inf
    %584 = vmax.xlane.f32.xlu0 %v583
    %v585 = vpop.xlane.xlu0 %584
    %v586 = vsub.f32 %v391, %v576
    %v587 = vsub.f32 %v452, %v579
    %v588 = vsub.f32 %v510, %v582
    %v589 = vsub.f32 %v568, %v585
    %v590 = vmul.f32 %v586, 1.442695
    %v591 = vpow.pop %v590
    %v592 = vmul.f32 %v587, 1.442695
    %v593 = vpow.pop %v592
    %v594 = vmul.f32 %v588, 1.442695
    %v595 = vpow.pop %v594
    %v596 = vmul.f32 %v589, 1.442695
    %v597 = vpow.pop %v596
    %v598 = vsel %vm573, %v591, 0.0
    %599 = vadd.xlane.f32.xlu0 %v598
    %v600 = vpop.xlane.xlu0 %599
    %v601 = vsel %vm573, %v593, 0.0
    %602 = vadd.xlane.f32.xlu0 %v601
    %v603 = vpop.xlane.xlu0 %602
    %v604 = vsel %vm573, %v595, 0.0
    %605 = vadd.xlane.f32.xlu0 %v604
    %v606 = vpop.xlane.xlu0 %605
    %v607 = vsel %vm573, %v597, 0.0
    %608 = vadd.xlane.f32.xlu0 %v607
    %v609 = vpop.xlane.xlu0 %608
    %v610 = vrcp.pop %v600
    %v611 = vrcp.pop %v603
    %v612 = vrcp.pop %v606
    %v613 = vrcp.pop %v609
    %v614 = vmul.f32 %v591, %v610
    %v615 = vmul.f32 %v593, %v611
    %v616 = vmul.f32 %v595, %v612
    %v617 = vmul.f32 %v597, %v613
    %v618 = vpack.c.bf16 %v615, %v614
    %v619 = vpack.c.bf16 %v617, %v616
    %622 = vrot.lane.b32.xlu0 %v336, 96
    %v623 = vpop.permute.xlu0 %622
    %624 = vrot.lane.b32.xlu0 %v337, 96
    %v625 = vpop.permute.xlu0 %624
    %v628 = vsel %vm573, %v618, 0
    %vm630 = vcmask 1040384
    %v631 = vsel 0, 4294967295, 65535
    %v632 = vsel %vm630, %v631, 0
    %v634 = vand.u32 %v625, %v632
    %636 = vmatprep.subr.bf16.mxu0 0
    %637 = vmatpush1.bf16.msra.mxu0 %v623
    %638 = vmatprep.subr.bf16.mxu0 0
    %639 = vmatpush1.bf16.msra.mxu0 %v634
    %640 = vmatprep.subr.bf16.mxu0 0
    %641 = vmatpush1.bf16.msra.mxu0 0
    %642 = vmatprep.subr.bf16.mxu0 0
    %643 = vmatpush1.bf16.msra.mxu0 0
    %644 = vmatprep.subr.bf16.mxu0 0
    %645 = vmatpush1.bf16.msra.mxu0 0
    %646 = vmatprep.subr.bf16.mxu0 0
    %647 = vmatpush1.bf16.msra.mxu0 0
    %648 = vmatprep.subr.bf16.mxu0 0
    %649 = vmatpush1.bf16.msra.mxu0 0
    %650 = vmatprep.subr.bf16.mxu0 0
    %651 = vmatpush1.bf16.msra.mxu0 0
    %652 = vmatprep.subr.bf16.mxu0 0
    %653 = vmatpush1.bf16.msra.mxu0 0
    %654 = vmatprep.subr.bf16.mxu0 0
    %655 = vmatpush1.bf16.msra.mxu0 0
    %656 = vmatprep.subr.bf16.mxu0 0
    %657 = vmatpush1.bf16.msra.mxu0 0
    %658 = vmatprep.subr.bf16.mxu0 0
    %659 = vmatpush1.bf16.msra.mxu0 0
    %660 = vmatprep.subr.bf16.mxu0 0
    %661 = vmatpush1.bf16.msra.mxu0 0
    %662 = vmatprep.subr.bf16.mxu0 0
    %663 = vmatpush1.bf16.msra.mxu0 0
    %664 = vmatprep.subr.bf16.mxu0 0
    %665 = vmatpush1.bf16.msra.mxu0 0
    %666 = vmatprep.subr.bf16.mxu0 0
    %667 = vmatpush1.bf16.msra.mxu0 0
    %668 = vmatprep.mubr.bf16.mxu0 0
    %669 = vmatmul.mubr.bf16.gmra.mrb[0].mxu0 %v628
    %v670 = vpop.f32.mrb[0].mxu0
    %v671 = vadd.f32 0.0, %v670
    %v672 = vpop.f32.mrb[0].mxu0
    %v673 = vpop.f32.mrb[0].mxu0
    %v674 = vpop.f32.mrb[0].mxu0
    %675 = vdwg.mxu0
    %v677 = vrot.slane %v618, 4
    %678 = vrot.lane.b32.xlu0 %v336, 88
    %v679 = vpop.permute.xlu0 %678
    %680 = vrot.lane.b32.xlu0 %v337, 88
    %v681 = vpop.permute.xlu0 %680
    %v684 = vsel %vm573, %v677, 0
    %v687 = vand.u32 %v681, %v632
    %689 = vmatprep.subr.bf16.mxu0 0
    %690 = vmatpush1.bf16.msra.mxu0 %v679
    %691 = vmatprep.subr.bf16.mxu0 0
    %692 = vmatpush1.bf16.msra.mxu0 %v687
    %693 = vmatprep.subr.bf16.mxu0 0
    %694 = vmatpush1.bf16.msra.mxu0 0
    %695 = vmatprep.subr.bf16.mxu0 0
    %696 = vmatpush1.bf16.msra.mxu0 0
    %697 = vmatprep.subr.bf16.mxu0 0
    %698 = vmatpush1.bf16.msra.mxu0 0
    %699 = vmatprep.subr.bf16.mxu0 0
    %700 = vmatpush1.bf16.msra.mxu0 0
    %701 = vmatprep.subr.bf16.mxu0 0
    %702 = vmatpush1.bf16.msra.mxu0 0
    %703 = vmatprep.subr.bf16.mxu0 0
    %704 = vmatpush1.bf16.msra.mxu0 0
    %705 = vmatprep.subr.bf16.mxu0 0
    %706 = vmatpush1.bf16.msra.mxu0 0
    %707 = vmatprep.subr.bf16.mxu0 0
    %708 = vmatpush1.bf16.msra.mxu0 0
    %709 = vmatprep.subr.bf16.mxu0 0
    %710 = vmatpush1.bf16.msra.mxu0 0
    %711 = vmatprep.subr.bf16.mxu0 0
    %712 = vmatpush1.bf16.msra.mxu0 0
    %713 = vmatprep.subr.bf16.mxu0 0
    %714 = vmatpush1.bf16.msra.mxu0 0
    %715 = vmatprep.subr.bf16.mxu0 0
    %716 = vmatpush1.bf16.msra.mxu0 0
    %717 = vmatprep.subr.bf16.mxu0 0
    %718 = vmatpush1.bf16.msra.mxu0 0
    %719 = vmatprep.subr.bf16.mxu0 0
    %720 = vmatpush1.bf16.msra.mxu0 0
    %721 = vmatprep.mubr.bf16.mxu0 0
    %722 = vmatmul.mubr.bf16.gmra.mrb[0].mxu0 %v684
    %v723 = vpop.f32.mrb[0].mxu0
    %v724 = vadd.f32 0.0, %v723
    %v725 = vpop.f32.mrb[0].mxu0
    %v726 = vpop.f32.mrb[0].mxu0
    %v727 = vpop.f32.mrb[0].mxu0
    %728 = vdwg.mxu0
    %729 = vrot.lane.b32.xlu0 %v336, 80
    %v730 = vpop.permute.xlu0 %729
    %731 = vrot.lane.b32.xlu0 %v337, 80
    %v732 = vpop.permute.xlu0 %731
    %v735 = vsel %vm573, %v619, 0
    %v738 = vand.u32 %v732, %v632
    %740 = vmatprep.subr.bf16.mxu0 0
    %741 = vmatpush1.bf16.msra.mxu0 %v730
    %742 = vmatprep.subr.bf16.mxu0 0
    %743 = vmatpush1.bf16.msra.mxu0 %v738
    %744 = vmatprep.subr.bf16.mxu0 0
    %745 = vmatpush1.bf16.msra.mxu0 0
    %746 = vmatprep.subr.bf16.mxu0 0
    %747 = vmatpush1.bf16.msra.mxu0 0
    %748 = vmatprep.subr.bf16.mxu0 0
    %749 = vmatpush1.bf16.msra.mxu0 0
    %750 = vmatprep.subr.bf16.mxu0 0
    %751 = vmatpush1.bf16.msra.mxu0 0
    %752 = vmatprep.subr.bf16.mxu0 0
    %753 = vmatpush1.bf16.msra.mxu0 0
    %754 = vmatprep.subr.bf16.mxu0 0
    %755 = vmatpush1.bf16.msra.mxu0 0
    %756 = vmatprep.subr.bf16.mxu0 0
    %757 = vmatpush1.bf16.msra.mxu0 0
    %758 = vmatprep.subr.bf16.mxu0 0
    %759 = vmatpush1.bf16.msra.mxu0 0
    %760 = vmatprep.subr.bf16.mxu0 0
    %761 = vmatpush1.bf16.msra.mxu0 0
    %762 = vmatprep.subr.bf16.mxu0 0
    %763 = vmatpush1.bf16.msra.mxu0 0
    %764 = vmatprep.subr.bf16.mxu0 0
    %765 = vmatpush1.bf16.msra.mxu0 0
    %766 = vmatprep.subr.bf16.mxu0 0
    %767 = vmatpush1.bf16.msra.mxu0 0
    %768 = vmatprep.subr.bf16.mxu0 0
    %769 = vmatpush1.bf16.msra.mxu0 0
    %770 = vmatprep.subr.bf16.mxu0 0
    %771 = vmatpush1.bf16.msra.mxu0 0
    %772 = vmatprep.mubr.bf16.mxu0 0
    %773 = vmatmul.mubr.bf16.gmra.mrb[0].mxu0 %v735
    %v774 = vpop.f32.mrb[0].mxu0
    %v775 = vadd.f32 0.0, %v774
    %v776 = vpop.f32.mrb[0].mxu0
    %v777 = vpop.f32.mrb[0].mxu0
    %v778 = vpop.f32.mrb[0].mxu0
    %779 = vdwg.mxu0
    %v781 = vrot.slane %v619, 4
    %782 = vrot.lane.b32.xlu0 %v336, 72
    %v783 = vpop.permute.xlu0 %782
    %784 = vrot.lane.b32.xlu0 %v337, 72
    %v785 = vpop.permute.xlu0 %784
    %v788 = vsel %vm573, %v781, 0
    %v791 = vand.u32 %v785, %v632
    %793 = vmatprep.subr.bf16.mxu0 0
    %794 = vmatpush1.bf16.msra.mxu0 %v783
    %795 = vmatprep.subr.bf16.mxu0 0
    %796 = vmatpush1.bf16.msra.mxu0 %v791
    %797 = vmatprep.subr.bf16.mxu0 0
    %798 = vmatpush1.bf16.msra.mxu0 0
    %799 = vmatprep.subr.bf16.mxu0 0
    %800 = vmatpush1.bf16.msra.mxu0 0
    %801 = vmatprep.subr.bf16.mxu0 0
    %802 = vmatpush1.bf16.msra.mxu0 0
    %803 = vmatprep.subr.bf16.mxu0 0
    %804 = vmatpush1.bf16.msra.mxu0 0
    %805 = vmatprep.subr.bf16.mxu0 0
    %806 = vmatpush1.bf16.msra.mxu0 0
    %807 = vmatprep.subr.bf16.mxu0 0
    %808 = vmatpush1.bf16.msra.mxu0 0
    %809 = vmatprep.subr.bf16.mxu0 0
    %810 = vmatpush1.bf16.msra.mxu0 0
    %811 = vmatprep.subr.bf16.mxu0 0
    %812 = vmatpush1.bf16.msra.mxu0 0
    %813 = vmatprep.subr.bf16.mxu0 0
    %814 = vmatpush1.bf16.msra.mxu0 0
    %815 = vmatprep.subr.bf16.mxu0 0
    %816 = vmatpush1.bf16.msra.mxu0 0
    %817 = vmatprep.subr.bf16.mxu0 0
    %818 = vmatpush1.bf16.msra.mxu0 0
    %819 = vmatprep.subr.bf16.mxu0 0
    %820 = vmatpush1.bf16.msra.mxu0 0
    %821 = vmatprep.subr.bf16.mxu0 0
    %822 = vmatpush1.bf16.msra.mxu0 0
    %823 = vmatprep.subr.bf16.mxu0 0
    %824 = vmatpush1.bf16.msra.mxu0 0
    %825 = vmatprep.mubr.bf16.mxu0 0
    %826 = vmatmul.mubr.bf16.gmra.mrb[0].mxu0 %v788
    %v827 = vpop.f32.mrb[0].mxu0
    %v828 = vadd.f32 0.0, %v827
    %v829 = vpop.f32.mrb[0].mxu0
    %v830 = vpop.f32.mrb[0].mxu0
    %v831 = vpop.f32.mrb[0].mxu0
    %832 = vdwg.mxu0
    %834 = vrot.lane.b32.xlu0 %v724, 8
    %v835 = vpop.permute.xlu0 %834
    %838 = vrot.lane.b32.xlu0 %v775, 16
    %v839 = vpop.permute.xlu0 %838
    %842 = vrot.lane.b32.xlu0 %v828, 24
    %v843 = vpop.permute.xlu0 %842
    %v845 = vsel %vm343, %v671, %v835
    %vm846 = vcmask 130048
    %v847 = vsel %vm846, %v845, %v839
    %vm848 = vcmask 195584
    %v849 = vsel %vm848, %v847, %v843
    %vm850 = vcmask 277640
    %v851 = vsel %vm850, %v391, -inf
    %852 = vmax.xlane.f32.xlu0 %v851
    %v853 = vpop.xlane.xlu0 %852
    %v854 = vsel %vm850, %v452, -inf
    %855 = vmax.xlane.f32.xlu0 %v854
    %v856 = vpop.xlane.xlu0 %855
    %v857 = vsel %vm850, %v510, -inf
    %858 = vmax.xlane.f32.xlu0 %v857
    %v859 = vpop.xlane.xlu0 %858
    %v860 = vsel %vm850, %v568, -inf
    %861 = vmax.xlane.f32.xlu0 %v860
    %v862 = vpop.xlane.xlu0 %861
    %v863 = vsub.f32 %v391, %v853
    %v864 = vsub.f32 %v452, %v856
    %v865 = vsub.f32 %v510, %v859
    %v866 = vsub.f32 %v568, %v862
    %v867 = vmul.f32 %v863, 1.442695
    %v868 = vpow.pop %v867
    %v869 = vmul.f32 %v864, 1.442695
    %v870 = vpow.pop %v869
    %v871 = vmul.f32 %v865, 1.442695
    %v872 = vpow.pop %v871
    %v873 = vmul.f32 %v866, 1.442695
    %v874 = vpow.pop %v873
    %879 = vrot.lane.b32.xlu0 %v868, 111
    %v880 = vpop.permute.xlu0 %879
    %881 = vrot.lane.b32.xlu0 %v870, 111
    %v882 = vpop.permute.xlu0 %881
    %883 = vrot.lane.b32.xlu0 %v872, 111
    %v884 = vpop.permute.xlu0 %883
    %885 = vrot.lane.b32.xlu0 %v874, 111
    %v886 = vpop.permute.xlu0 %885
    %v891 = vsel %vm573, %v880, 0.0
    %892 = vadd.xlane.f32.xlu0 %v891
    %v893 = vpop.xlane.xlu0 %892
    %v894 = vsel %vm573, %v882, 0.0
    %895 = vadd.xlane.f32.xlu0 %v894
    %v896 = vpop.xlane.xlu0 %895
    %v897 = vsel %vm573, %v884, 0.0
    %898 = vadd.xlane.f32.xlu0 %v897
    %v899 = vpop.xlane.xlu0 %898
    %v900 = vsel %vm573, %v886, 0.0
    %901 = vadd.xlane.f32.xlu0 %v900
    %v902 = vpop.xlane.xlu0 %901
    %v903 = vrcp.pop %v893
    %v904 = vrcp.pop %v896
    %v905 = vrcp.pop %v899
    %v906 = vrcp.pop %v902
    %v907 = vmul.f32 %v868, %v903
    %v908 = vmul.f32 %v870, %v904
    %v909 = vmul.f32 %v872, %v905
    %v910 = vmul.f32 %v874, %v906
    %v911 = vpack.c.bf16 %v908, %v907
    %v912 = vpack.c.bf16 %v910, %v909
    %914 = vrot.lane.b32.xlu0 %v911, 111
    %v915 = vpop.permute.xlu0 %914
    %vm916 = vsmask.f32 7424
    %v918 = vshrl.u32 %v337, 16
    %v920 = vshll.u32 %v337, 16
    %v922 = vrot.slane %v920, 1
    %v923 = vor.u32 %v918, %v922
    %v925 = vshll.u32 %v338, 16
    %v927 = vrot.slane %v925, 1
    %v928 = vsel %vm916, %v923, %v927
    %v929 = vshrl.u32 %v338, 16
    %931 = vrot.lane.b32.xlu0 %v928, 96
    %v932 = vpop.permute.xlu0 %931
    %933 = vrot.lane.b32.xlu0 %v929, 96
    %v934 = vpop.permute.xlu0 %933
    %v937 = vsel %vm573, %v915, 0
    %v940 = vand.u32 %v934, %v632
    %942 = vmatprep.subr.bf16.mxu0 0
    %943 = vmatpush1.bf16.msra.mxu0 %v932
    %944 = vmatprep.subr.bf16.mxu0 0
    %945 = vmatpush1.bf16.msra.mxu0 %v940
    %946 = vmatprep.subr.bf16.mxu0 0
    %947 = vmatpush1.bf16.msra.mxu0 0
    %948 = vmatprep.subr.bf16.mxu0 0
    %949 = vmatpush1.bf16.msra.mxu0 0
    %950 = vmatprep.subr.bf16.mxu0 0
    %951 = vmatpush1.bf16.msra.mxu0 0
    %952 = vmatprep.subr.bf16.mxu0 0
    %953 = vmatpush1.bf16.msra.mxu0 0
    %954 = vmatprep.subr.bf16.mxu0 0
    %955 = vmatpush1.bf16.msra.mxu0 0
    %956 = vmatprep.subr.bf16.mxu0 0
    %957 = vmatpush1.bf16.msra.mxu0 0
    %958 = vmatprep.subr.bf16.mxu0 0
    %959 = vmatpush1.bf16.msra.mxu0 0
    %960 = vmatprep.subr.bf16.mxu0 0
    %961 = vmatpush1.bf16.msra.mxu0 0
    %962 = vmatprep.subr.bf16.mxu0 0
    %963 = vmatpush1.bf16.msra.mxu0 0
    %964 = vmatprep.subr.bf16.mxu0 0
    %965 = vmatpush1.bf16.msra.mxu0 0
    %966 = vmatprep.subr.bf16.mxu0 0
    %967 = vmatpush1.bf16.msra.mxu0 0
    %968 = vmatprep.subr.bf16.mxu0 0
    %969 = vmatpush1.bf16.msra.mxu0 0
    %970 = vmatprep.subr.bf16.mxu0 0
    %971 = vmatpush1.bf16.msra.mxu0 0
    %972 = vmatprep.subr.bf16.mxu0 0
    %973 = vmatpush1.bf16.msra.mxu0 0
    %974 = vmatprep.mubr.bf16.mxu0 0
    %975 = vmatmul.mubr.bf16.gmra.mrb[0].mxu0 %v937
    %v976 = vpop.f32.mrb[0].mxu0
    %v977 = vadd.f32 0.0, %v976
    %v978 = vpop.f32.mrb[0].mxu0
    %v979 = vpop.f32.mrb[0].mxu0
    %v980 = vpop.f32.mrb[0].mxu0
    %981 = vdwg.mxu0
    %v982 = vrot.slane %v911, 4
    %983 = vrot.lane.b32.xlu0 %v982, 111
    %v984 = vpop.permute.xlu0 %983
    %985 = vrot.lane.b32.xlu0 %v928, 88
    %v986 = vpop.permute.xlu0 %985
    %987 = vrot.lane.b32.xlu0 %v929, 88
    %v988 = vpop.permute.xlu0 %987
    %v991 = vsel %vm573, %v984, 0
    %v994 = vand.u32 %v988, %v632
    %996 = vmatprep.subr.bf16.mxu0 0
    %997 = vmatpush1.bf16.msra.mxu0 %v986
    %998 = vmatprep.subr.bf16.mxu0 0
    %999 = vmatpush1.bf16.msra.mxu0 %v994
    %1000 = vmatprep.subr.bf16.mxu0 0
    %1001 = vmatpush1.bf16.msra.mxu0 0
    %1002 = vmatprep.subr.bf16.mxu0 0
    %1003 = vmatpush1.bf16.msra.mxu0 0
    %1004 = vmatprep.subr.bf16.mxu0 0
    %1005 = vmatpush1.bf16.msra.mxu0 0
    %1006 = vmatprep.subr.bf16.mxu0 0
    %1007 = vmatpush1.bf16.msra.mxu0 0
    %1008 = vmatprep.subr.bf16.mxu0 0
    %1009 = vmatpush1.bf16.msra.mxu0 0
    %1010 = vmatprep.subr.bf16.mxu0 0
    %1011 = vmatpush1.bf16.msra.mxu0 0
    %1012 = vmatprep.subr.bf16.mxu0 0
    %1013 = vmatpush1.bf16.msra.mxu0 0
    %1014 = vmatprep.subr.bf16.mxu0 0
    %1015 = vmatpush1.bf16.msra.mxu0 0
    %1016 = vmatprep.subr.bf16.mxu0 0
    %1017 = vmatpush1.bf16.msra.mxu0 0
    %1018 = vmatprep.subr.bf16.mxu0 0
    %1019 = vmatpush1.bf16.msra.mxu0 0
    %1020 = vmatprep.subr.bf16.mxu0 0
    %1021 = vmatpush1.bf16.msra.mxu0 0
    %1022 = vmatprep.subr.bf16.mxu0 0
    %1023 = vmatpush1.bf16.msra.mxu0 0
    %1024 = vmatprep.subr.bf16.mxu0 0
    %1025 = vmatpush1.bf16.msra.mxu0 0
    %1026 = vmatprep.subr.bf16.mxu0 0
    %1027 = vmatpush1.bf16.msra.mxu0 0
    %1028 = vmatprep.mubr.bf16.mxu0 0
    %1029 = vmatmul.mubr.bf16.gmra.mrb[0].mxu0 %v991
    %v1030 = vpop.f32.mrb[0].mxu0
    %v1031 = vadd.f32 0.0, %v1030
    %v1032 = vpop.f32.mrb[0].mxu0
    %v1033 = vpop.f32.mrb[0].mxu0
    %v1034 = vpop.f32.mrb[0].mxu0
    %1035 = vdwg.mxu0
    %1037 = vrot.lane.b32.xlu0 %v912, 111
    %v1038 = vpop.permute.xlu0 %1037
    %1039 = vrot.lane.b32.xlu0 %v928, 80
    %v1040 = vpop.permute.xlu0 %1039
    %1041 = vrot.lane.b32.xlu0 %v929, 80
    %v1042 = vpop.permute.xlu0 %1041
    %v1045 = vsel %vm573, %v1038, 0
    %v1048 = vand.u32 %v1042, %v632
    %1050 = vmatprep.subr.bf16.mxu0 0
    %1051 = vmatpush1.bf16.msra.mxu0 %v1040
    %1052 = vmatprep.subr.bf16.mxu0 0
    %1053 = vmatpush1.bf16.msra.mxu0 %v1048
    %1054 = vmatprep.subr.bf16.mxu0 0
    %1055 = vmatpush1.bf16.msra.mxu0 0
    %1056 = vmatprep.subr.bf16.mxu0 0
    %1057 = vmatpush1.bf16.msra.mxu0 0
    %1058 = vmatprep.subr.bf16.mxu0 0
    %1059 = vmatpush1.bf16.msra.mxu0 0
    %1060 = vmatprep.subr.bf16.mxu0 0
    %1061 = vmatpush1.bf16.msra.mxu0 0
    %1062 = vmatprep.subr.bf16.mxu0 0
    %1063 = vmatpush1.bf16.msra.mxu0 0
    %1064 = vmatprep.subr.bf16.mxu0 0
    %1065 = vmatpush1.bf16.msra.mxu0 0
    %1066 = vmatprep.subr.bf16.mxu0 0
    %1067 = vmatpush1.bf16.msra.mxu0 0
    %1068 = vmatprep.subr.bf16.mxu0 0
    %1069 = vmatpush1.bf16.msra.mxu0 0
    %1070 = vmatprep.subr.bf16.mxu0 0
    %1071 = vmatpush1.bf16.msra.mxu0 0
    %1072 = vmatprep.subr.bf16.mxu0 0
    %1073 = vmatpush1.bf16.msra.mxu0 0
    %1074 = vmatprep.subr.bf16.mxu0 0
    %1075 = vmatpush1.bf16.msra.mxu0 0
    %1076 = vmatprep.subr.bf16.mxu0 0
    %1077 = vmatpush1.bf16.msra.mxu0 0
    %1078 = vmatprep.subr.bf16.mxu0 0
    %1079 = vmatpush1.bf16.msra.mxu0 0
    %1080 = vmatprep.subr.bf16.mxu0 0
    %1081 = vmatpush1.bf16.msra.mxu0 0
    %1082 = vmatprep.mubr.bf16.mxu0 0
    %1083 = vmatmul.mubr.bf16.gmra.mrb[0].mxu0 %v1045
    %v1084 = vpop.f32.mrb[0].mxu0
    %v1085 = vadd.f32 0.0, %v1084
    %v1086 = vpop.f32.mrb[0].mxu0
    %v1087 = vpop.f32.mrb[0].mxu0
    %v1088 = vpop.f32.mrb[0].mxu0
    %1089 = vdwg.mxu0
    %v1090 = vrot.slane %v912, 4
    %1091 = vrot.lane.b32.xlu0 %v1090, 111
    %v1092 = vpop.permute.xlu0 %1091
    %1093 = vrot.lane.b32.xlu0 %v928, 72
    %v1094 = vpop.permute.xlu0 %1093
    %1095 = vrot.lane.b32.xlu0 %v929, 72
    %v1096 = vpop.permute.xlu0 %1095
    %v1099 = vsel %vm573, %v1092, 0
    %v1102 = vand.u32 %v1096, %v632
    %1104 = vmatprep.subr.bf16.mxu0 0
    %1105 = vmatpush1.bf16.msra.mxu0 %v1094
    %1106 = vmatprep.subr.bf16.mxu0 0
    %1107 = vmatpush1.bf16.msra.mxu0 %v1102
    %1108 = vmatprep.subr.bf16.mxu0 0
    %1109 = vmatpush1.bf16.msra.mxu0 0
    %1110 = vmatprep.subr.bf16.mxu0 0
    %1111 = vmatpush1.bf16.msra.mxu0 0
    %1112 = vmatprep.subr.bf16.mxu0 0
    %1113 = vmatpush1.bf16.msra.mxu0 0
    %1114 = vmatprep.subr.bf16.mxu0 0
    %1115 = vmatpush1.bf16.msra.mxu0 0
    %1116 = vmatprep.subr.bf16.mxu0 0
    %1117 = vmatpush1.bf16.msra.mxu0 0
    %1118 = vmatprep.subr.bf16.mxu0 0
    %1119 = vmatpush1.bf16.msra.mxu0 0
    %1120 = vmatprep.subr.bf16.mxu0 0
    %1121 = vmatpush1.bf16.msra.mxu0 0
    %1122 = vmatprep.subr.bf16.mxu0 0
    %1123 = vmatpush1.bf16.msra.mxu0 0
    %1124 = vmatprep.subr.bf16.mxu0 0
    %1125 = vmatpush1.bf16.msra.mxu0 0
    %1126 = vmatprep.subr.bf16.mxu0 0
    %1127 = vmatpush1.bf16.msra.mxu0 0
    %1128 = vmatprep.subr.bf16.mxu0 0
    %1129 = vmatpush1.bf16.msra.mxu0 0
    %1130 = vmatprep.subr.bf16.mxu0 0
    %1131 = vmatpush1.bf16.msra.mxu0 0
    %1132 = vmatprep.subr.bf16.mxu0 0
    %1133 = vmatpush1.bf16.msra.mxu0 0
    %1134 = vmatprep.subr.bf16.mxu0 0
    %1135 = vmatpush1.bf16.msra.mxu0 0
    %1136 = vmatprep.mubr.bf16.mxu0 0
    %1137 = vmatmul.mubr.bf16.gmra.mrb[0].mxu0 %v1099
    %v1138 = vpop.f32.mrb[0].mxu0
    %v1139 = vadd.f32 0.0, %v1138
    %v1140 = vpop.f32.mrb[0].mxu0
    %v1141 = vpop.f32.mrb[0].mxu0
    %v1142 = vpop.f32.mrb[0].mxu0
    %1143 = vdwg.mxu0
    %1145 = vrot.lane.b32.xlu0 %v1031, 8
    %v1146 = vpop.permute.xlu0 %1145
    %1149 = vrot.lane.b32.xlu0 %v1085, 16
    %v1150 = vpop.permute.xlu0 %1149
    %1153 = vrot.lane.b32.xlu0 %v1139, 24
    %v1154 = vpop.permute.xlu0 %1153
    %v1156 = vsel %vm343, %v977, %v1146
    %v1157 = vsel %vm846, %v1156, %v1150
    %v1158 = vsel %vm848, %v1157, %v1154
    %v1159 = vpack.c.bf16 %v1158, %v849
    %v1160 = vld [vmem:[%s6] sm:$0xf]
    %v1161 = vld [vmem:[%s6 + $0x4] sm:$0xf]
    %v1162 = vld [vmem:[%s6 + $0x8] sm:$0xf]
    %v1163 = vld [vmem:[%s6 + $0xc] sm:$0xf]
    %v1168 = vunpack.c.l.b16 %v1160
    %v1169 = vunpack.c.l.b16 %v1161
    %v1170 = vunpack.c.l.b16 %v1162
    %v1171 = vunpack.c.l.b16 %v1163
    %v1172 = vpack.c.b16 %v1169, %v1168
    %v1173 = vpack.c.b16 %v1171, %v1170
    %v1177 = vsel %vm153, %v1159, 0
    %1179 = vmatprep.subr.bf16.mxu0 0
    %1180 = vmatpush1.bf16.msra.mxu0 %v1172
    %1181 = vmatprep.subr.bf16.mxu0 0
    %1182 = vmatpush1.bf16.msra.mxu0 %v1173
    %1183 = vmatprep.subr.bf16.mxu0 0
    %1184 = vmatpush1.bf16.msra.mxu0 0
    %1185 = vmatprep.subr.bf16.mxu0 0
    %1186 = vmatpush1.bf16.msra.mxu0 0
    %1187 = vmatprep.subr.bf16.mxu0 0
    %1188 = vmatpush1.bf16.msra.mxu0 0
    %1189 = vmatprep.subr.bf16.mxu0 0
    %1190 = vmatpush1.bf16.msra.mxu0 0
    %1191 = vmatprep.subr.bf16.mxu0 0
    %1192 = vmatpush1.bf16.msra.mxu0 0
    %1193 = vmatprep.subr.bf16.mxu0 0
    %1194 = vmatpush1.bf16.msra.mxu0 0
    %1195 = vmatprep.subr.bf16.mxu0 0
    %1196 = vmatpush1.bf16.msra.mxu0 0
    %1197 = vmatprep.subr.bf16.mxu0 0
    %1198 = vmatpush1.bf16.msra.mxu0 0
    %1199 = vmatprep.subr.bf16.mxu0 0
    %1200 = vmatpush1.bf16.msra.mxu0 0
    %1201 = vmatprep.subr.bf16.mxu0 0
    %1202 = vmatpush1.bf16.msra.mxu0 0
    %1203 = vmatprep.subr.bf16.mxu0 0
    %1204 = vmatpush1.bf16.msra.mxu0 0
    %1205 = vmatprep.subr.bf16.mxu0 0
    %1206 = vmatpush1.bf16.msra.mxu0 0
    %1207 = vmatprep.subr.bf16.mxu0 0
    %1208 = vmatpush1.bf16.msra.mxu0 0
    %1209 = vmatprep.subr.bf16.mxu0 0
    %1210 = vmatpush1.bf16.msra.mxu0 0
    %1211 = vmatprep.mubr.bf16.mxu0 0
    %1212 = vmatmul.mubr.bf16.gmra.mrb[0].mxu0 %v1177
    %v1213 = vpop.f32.mrb[0].mxu0
    %v1214 = vadd.f32 0.0, %v1213
    %v1215 = vpop.f32.mrb[0].mxu0
    %v1216 = vpop.f32.mrb[0].mxu0
    %v1217 = vadd.f32 0.0, %v1216
    %v1218 = vpop.f32.mrb[0].mxu0
    %1219 = vdwg.mxu0
    %v1220 = vld [vmem:[%s2] sm:$0xff]
    %v1221 = vld [vmem:[%s2 + $0x8] sm:$0xff]
    %v1222 = vadd.f32 %v1220, %v1214
    %v1223 = vadd.f32 %v1221, %v1217
    %v1224 = vsel %vm153, %v1222, 0.0
    %1225 = vadd.xlane.f32.xlu0 %v1224
    %v1226 = vpop.xlane.xlu0 %1225
    %v1227 = vsel %vm153, %v1223, 0.0
    %1228 = vadd.xlane.f32.xlu0 %v1227
    %v1229 = vpop.xlane.xlu0 %1228
    %v1230 = vmul.f32 %v1226, %v170
    %v1231 = vmul.f32 %v1229, %v170
    %v1232 = vsub.f32 %v1222, %v1230
    %v1233 = vsub.f32 %v1223, %v1231
    %v1234 = vmul.f32 %v1232, %v1232
    %v1235 = vmul.f32 %v1233, %v1233
    %v1236 = vsel %vm153, %v1234, 0.0
    %1237 = vadd.xlane.f32.xlu0 %v1236
    %v1238 = vpop.xlane.xlu0 %1237
    %v1239 = vsel %vm153, %v1235, 0.0
    %1240 = vadd.xlane.f32.xlu0 %v1239
    %v1241 = vpop.xlane.xlu0 %1240
    %v1242 = vmul.f32 %v1238, %v170
    %v1243 = vmul.f32 %v1241, %v170
    %v1244 = vadd.f32 %v1242, 0.0001
    %v1245 = vadd.f32 %v1243, 0.0001
    %v1246 = vrsqrt.pop %v1244
    %v1247 = vrsqrt.pop %v1245
    %v1248 = vmul.f32 %v1232, %v1246
    %v1249 = vmul.f32 %v1233, %v1247
    %v1250 = vlaneseq
    %v1251 = vshrl.u32 %v1250, 7
    %v1252 = vsub.s32 3, %v1251
    %v1253 = vrot.slane %v40, %v1252
    %v1254 = vmul.f32 %v1248, %v1253
    %v1255 = vmul.f32 %v1249, %v1253
    %v1256 = vlaneseq
    %v1257 = vshrl.u32 %v1256, 7
    %v1258 = vsub.s32 4, %v1257
    %v1259 = vrot.slane %v40, %v1258
    %v1260 = vadd.f32 %v1254, %v1259
    %v1261 = vadd.f32 %v1255, %v1259
    %v1262 = vpack.c.bf16 %v1261, %v1260
    %v1263 = vld [vmem:[%s7] sm:$0xf]
    %v1264 = vld [vmem:[%s7 + $0x4] sm:$0xf]
    %v1265 = vld [vmem:[%s7 + $0x8] sm:$0xf]
    %v1266 = vld [vmem:[%s7 + $0xc] sm:$0xf]
    %v1267 = vld [vmem:[%s10] sm:$0x1]
    %v1269 = vlaneseq
    %v1270 = vshrl.u32 %v1269, 7
    %v1271 = vsub.s32 0, %v1270
    %v1272 = vrot.slane %v1267, %v1271
    %v1278 = vunpack.c.l.b16 %v1263
    %v1279 = vunpack.c.l.b16 %v1264
    %v1280 = vunpack.c.l.b16 %v1265
    %v1281 = vunpack.c.l.b16 %v1266
    %v1282 = vpack.c.b16 %v1279, %v1278
    %v1283 = vpack.c.b16 %v1281, %v1280
    %v1287 = vsel %vm153, %v1262, 0
    %1289 = vmatprep.subr.bf16.mxu0 0
    %1290 = vmatpush1.bf16.msra.mxu0 %v1282
    %1291 = vmatprep.subr.bf16.mxu0 0
    %1292 = vmatpush1.bf16.msra.mxu0 %v1283
    %1293 = vmatprep.subr.bf16.mxu0 0
    %1294 = vmatpush1.bf16.msra.mxu0 0
    %1295 = vmatprep.subr.bf16.mxu0 0
    %1296 = vmatpush1.bf16.msra.mxu0 0
    %1297 = vmatprep.subr.bf16.mxu0 0
    %1298 = vmatpush1.bf16.msra.mxu0 0
    %1299 = vmatprep.subr.bf16.mxu0 0
    %1300 = vmatpush1.bf16.msra.mxu0 0
    %1301 = vmatprep.subr.bf16.mxu0 0
    %1302 = vmatpush1.bf16.msra.mxu0 0
    %1303 = vmatprep.subr.bf16.mxu0 0
    %1304 = vmatpush1.bf16.msra.mxu0 0
    %1305 = vmatprep.subr.bf16.mxu0 0
    %1306 = vmatpush1.bf16.msra.mxu0 0
    %1307 = vmatprep.subr.bf16.mxu0 0
    %1308 = vmatpush1.bf16.msra.mxu0 0
    %1309 = vmatprep.subr.bf16.mxu0 0
    %1310 = vmatpush1.bf16.msra.mxu0 0
    %1311 = vmatprep.subr.bf16.mxu0 0
    %1312 = vmatpush1.bf16.msra.mxu0 0
    %1313 = vmatprep.subr.bf16.mxu0 0
    %1314 = vmatpush1.bf16.msra.mxu0 0
    %1315 = vmatprep.subr.bf16.mxu0 0
    %1316 = vmatpush1.bf16.msra.mxu0 0
    %1317 = vmatprep.subr.bf16.mxu0 0
    %1318 = vmatpush1.bf16.msra.mxu0 0
    %1319 = vmatprep.subr.bf16.mxu0 0
    %1320 = vmatpush1.bf16.msra.mxu0 0
    %1321 = vmatprep.mubr.bf16.mxu0 0
    %1322 = vmatmul.mubr.bf16.gmra.mrb[0].mxu0 %v1287
    %v1323 = vpop.f32.mrb[0].mxu0
    %v1324 = vadd.f32 %v1272, %v1323
    %v1325 = vpop.f32.mrb[0].mxu0
    %v1326 = vpop.f32.mrb[0].mxu0
    %v1327 = vadd.f32 %v1272, %v1326
    %v1328 = vpop.f32.mrb[0].mxu0
    %1329 = vdwg.mxu0
    %v1330 = vxor.u32 %v1324, 2147483648
    %v1331 = vxor.u32 %v1327, 2147483648
    %v1332 = vmul.f32 %v1330, 1.442695
    %v1333 = vpow.pop %v1332
    %v1334 = vmul.f32 %v1331, 1.442695
    %v1335 = vpow.pop %v1334
    %v1336 = vadd.f32 %v1333, 1.0
    %v1337 = vadd.f32 %v1335, 1.0
    %v1338 = vrcp.pop %v1336
    %v1339 = vmul.f32 1.0, %v1338
    %v1340 = vrcp.pop %v1337
    %v1341 = vmul.f32 1.0, %v1340
    %v1342 = vmul.f32 %v1324, %v1339
    %v1343 = vmul.f32 %v1327, %v1341
    %v1344 = vpack.c.bf16 %v1343, %v1342
    %v1345 = vld [vmem:[%s8] sm:$0xf]
    %v1346 = vld [vmem:[%s8 + $0x4] sm:$0xf]
    %v1347 = vld [vmem:[%s8 + $0x8] sm:$0xf]
    %v1348 = vld [vmem:[%s8 + $0xc] sm:$0xf]
    %v1349 = vld [vmem:[%s8 + $0x10] sm:$0xf]
    %v1350 = vld [vmem:[%s8 + $0x14] sm:$0xf]
    %v1351 = vld [vmem:[%s8 + $0x18] sm:$0xf]
    %v1352 = vld [vmem:[%s8 + $0x1c] sm:$0xf]
    %v1353 = vlaneseq
    %v1354 = vshrl.u32 %v1353, 7
    %v1355 = vsub.s32 5, %v1354
    %v1356 = vrot.slane %v40, %v1355
    %v1365 = vunpack.c.l.b16 %v1345
    %v1366 = vunpack.c.l.b16 %v1346
    %v1367 = vunpack.c.l.b16 %v1347
    %v1368 = vunpack.c.l.b16 %v1348
    %v1369 = vunpack.c.l.b16 %v1349
    %v1370 = vunpack.c.l.b16 %v1350
    %v1371 = vunpack.c.l.b16 %v1351
    %v1372 = vunpack.c.l.b16 %v1352
    %v1373 = vpack.c.b16 %v1366, %v1365
    %v1374 = vpack.c.b16 %v1368, %v1367
    %v1375 = vpack.c.b16 %v1370, %v1369
    %v1376 = vpack.c.b16 %v1372, %v1371
    %vm1381 = vcmask 523264
    %v1383 = vsel %vm1381, %v1344, 0
    %1385 = vmatprep.subr.bf16.mxu0 0
    %1386 = vmatpush1.bf16.msra.mxu0 %v1373
    %1387 = vmatprep.subr.bf16.mxu0 0
    %1388 = vmatpush1.bf16.msra.mxu0 %v1374
    %1389 = vmatprep.subr.bf16.mxu0 0
    %1390 = vmatpush1.bf16.msra.mxu0 %v1375
    %1391 = vmatprep.subr.bf16.mxu0 0
    %1392 = vmatpush1.bf16.msra.mxu0 %v1376
    %1393 = vmatprep.subr.bf16.mxu0 0
    %1394 = vmatpush1.bf16.msra.mxu0 0
    %1395 = vmatprep.subr.bf16.mxu0 0
    %1396 = vmatpush1.bf16.msra.mxu0 0
    %1397 = vmatprep.subr.bf16.mxu0 0
    %1398 = vmatpush1.bf16.msra.mxu0 0
    %1399 = vmatprep.subr.bf16.mxu0 0
    %1400 = vmatpush1.bf16.msra.mxu0 0
    %1401 = vmatprep.subr.bf16.mxu0 0
    %1402 = vmatpush1.bf16.msra.mxu0 0
    %1403 = vmatprep.subr.bf16.mxu0 0
    %1404 = vmatpush1.bf16.msra.mxu0 0
    %1405 = vmatprep.subr.bf16.mxu0 0
    %1406 = vmatpush1.bf16.msra.mxu0 0
    %1407 = vmatprep.subr.bf16.mxu0 0
    %1408 = vmatpush1.bf16.msra.mxu0 0
    %1409 = vmatprep.subr.bf16.mxu0 0
    %1410 = vmatpush1.bf16.msra.mxu0 0
    %1411 = vmatprep.subr.bf16.mxu0 0
    %1412 = vmatpush1.bf16.msra.mxu0 0
    %1413 = vmatprep.subr.bf16.mxu0 0
    %1414 = vmatpush1.bf16.msra.mxu0 0
    %1415 = vmatprep.subr.bf16.mxu0 0
    %1416 = vmatpush1.bf16.msra.mxu0 0
    %1417 = vmatprep.mubr.bf16.mxu0 0
    %1418 = vmatmul.mubr.bf16.gmra.mrb[0].mxu0 %v1383
    %v1419 = vpop.f32.mrb[0].mxu0
    %v1420 = vadd.f32 %v1356, %v1419
    %v1421 = vpop.f32.mrb[0].mxu0
    %v1422 = vpop.f32.mrb[0].mxu0
    %v1423 = vadd.f32 %v1356, %v1422
    %v1424 = vpop.f32.mrb[0].mxu0
    %1425 = vdwg.mxu0
    %v1426 = vadd.f32 %v1260, %v1420
    %v1427 = vadd.f32 %v1261, %v1423
    %v1428 = vsel %vm153, %v1426, 0.0
    %1429 = vadd.xlane.f32.xlu0 %v1428
    %v1430 = vpop.xlane.xlu0 %1429
    %v1431 = vsel %vm153, %v1427, 0.0
    %1432 = vadd.xlane.f32.xlu0 %v1431
    %v1433 = vpop.xlane.xlu0 %1432
    %v1434 = vmul.f32 %v1430, %v170
    %v1435 = vmul.f32 %v1433, %v170
    %v1436 = vsub.f32 %v1426, %v1434
    %v1437 = vsub.f32 %v1427, %v1435
    %v1438 = vmul.f32 %v1436, %v1436
    %v1439 = vmul.f32 %v1437, %v1437
    %v1440 = vsel %vm153, %v1438, 0.0
    %1441 = vadd.xlane.f32.xlu0 %v1440
    %v1442 = vpop.xlane.xlu0 %1441
    %v1443 = vsel %vm153, %v1439, 0.0
    %1444 = vadd.xlane.f32.xlu0 %v1443
    %v1445 = vpop.xlane.xlu0 %1444
    %v1446 = vmul.f32 %v1442, %v170
    %v1447 = vmul.f32 %v1445, %v170
    %v1448 = vadd.f32 %v1446, 0.0001
    %v1449 = vadd.f32 %v1447, 0.0001
    %v1450 = vrsqrt.pop %v1448
    %v1451 = vrsqrt.pop %v1449
    %v1452 = vmul.f32 %v1436, %v1450
    %v1453 = vmul.f32 %v1437, %v1451
    %v1454 = vlaneseq
    %v1455 = vshrl.u32 %v1454, 7
    %v1456 = vsub.s32 6, %v1455
    %v1457 = vrot.slane %v40, %v1456
    %v1458 = vmul.f32 %v1452, %v1457
    %v1459 = vmul.f32 %v1453, %v1457
    %v1460 = vlaneseq
    %v1461 = vshrl.u32 %v1460, 7
    %v1462 = vsub.s32 7, %v1461
    %v1463 = vrot.slane %v40, %v1462
    %v1464 = vadd.f32 %v1458, %v1463
    %v1465 = vadd.f32 %v1459, %v1463
    %v1466 = vpack.c.bf16 %v1465, %v1464
    %v1468 = vunpack.c.l.b16 %v1466
    %v1469 = vunpack.c.h.b16 %v1466
    %v1470 = vpack.c.b16 %v1468, %v1468
    %v1471 = vpack.c.b16 %v1469, %v1469
    %vm1474 = vcmask 257024
    %1475 = vst.msk [vmem:[#allocation2] sm:$0xf] %vm1474, %v1470
    %1476 = vst.msk [vmem:[#allocation2 + $0x4] sm:$0xf] %vm1474, %v1471
    // Predicated region
    $region46: #{tpu_custom_call.1} parent=1 // pred_check
      _
    $region47: #{tpu_custom_call.1} parent=1 // pred_check_branch
      %1478 = sbr.rel (0) target = $region49
    $region48: #{tpu_custom_call.1} parent=1 // pred_region
      %s1480 = ssub.s32 128, 128
      %1481 = vsyncadd [#allocation3], %s1480
      %s1482 = sshll.u32 [#allocation2], 4
      %s1483 = int_to_ptr.vmem [resolvable:$true] %s1482
      %1488 = dma.vmem_to_hbm [thread:$0]  %s1483, 128, %s11, [#allocation3], 64, 64, 4
    $region49: #{tpu_custom_call.1} parent=1 // pred_fallthru
      _
    // Predicated region
    $region50: #{tpu_custom_call.1} parent=1 // pred_check
      _
    $region51: #{tpu_custom_call.1} parent=1 // pred_check_branch
      %1490 = sbr.rel (0) target = $region53
    $region52: #{tpu_custom_call.1} parent=1 // pred_region
      %1491 = dma.done [#allocation3], 128
    $region53: #{tpu_custom_call.1} parent=1 // pred_fallthru
      _
    %1492 = vsyncpa [#allocation3], 1

</llo_original>
